<compile_context>
chip_gen: v7x
topology: tpu7x:2x2x1
jax: 0.10.0
libtpu: 0.0.40
codegen_flags: <defaults>
</compile_context>

<pallas_src>
import jax
import jax.numpy as jnp
from jax.experimental import pallas as pl
from jax.experimental.pallas import tpu as pltpu

_H1 = 400   # layer 1/4 width
_H2 = 300   # layer 2/5 width


# ---------------------------------------------------------------------------
# Kernel
# ---------------------------------------------------------------------------

def critic_kernel(xu_ref, w14_ref, w25_ref, small_ref, out_ref):
    """Fused twin-Q forward.

    xu_ref:    (B, in_dim)      f32
    w14_ref:   (2, in_dim, 400) f32   (head-stacked layer 1 / layer 4 weights)
    w25_ref:   (2, 400, 300)    bf16  (head-stacked layer 2 / layer 5 weights)
    small_ref: (2, 4, 400)      f32   rows = [b1, b2(:300), w3_row(:300), b3(:1)]
    out_ref:   (B, 2)           f32   column h = Q_h
    """
    xu = xu_ref[...]                                   # (B, in_dim) f32

    for h in range(2):                                 # unrolled at trace time
        w1 = w14_ref[h]                                # (in_dim, 400) f32
        w2 = w25_ref[h].astype(jnp.float32)            # (400, 300) bf16 -> f32
        small = small_ref[h]                           # (4, 400) f32
        b1 = small[0:1, :]                             # (1, 400)
        b2 = small[1:2, 0:_H2]                         # (1, 300)
        w3 = small[2:3, 0:_H2]                         # (1, 300)
        b3 = small[3:4, 0:1]                           # (1, 1)

        # Layer 1: single K=8 matmul (no split-K slicing), f32 MXU.
        a = jnp.dot(xu, w1, preferred_element_type=jnp.float32) + b1
        a = jnp.maximum(a, 0.0)
        # Layer 2: bf16-stored weights upcast to f32; f32 activations + accum.
        a = jnp.dot(a, w2, preferred_element_type=jnp.float32) + b2
        a = jnp.maximum(a, 0.0)
        # Layer 3 (300 -> 1): VPU multiply + XLU lane reduce (no MXU pass).
        q = jnp.sum(a * w3, axis=-1, keepdims=True) + b3   # (B, 1)

        out_ref[:, h:h + 1] = q.astype(out_ref.dtype)


# ---------------------------------------------------------------------------
# Wrapper
# ---------------------------------------------------------------------------

def critic_forward(x, u, params):
    """x: (B, state_dim), u: (B, action_dim). Returns (q1, q2), each (B, 1)."""
    B = x.shape[0]
    xu = jnp.concatenate([x, u], axis=1).astype(jnp.float32)   # (B, in_dim)
    in_dim = xu.shape[1]

    w14 = params["w14"]      # (2, in_dim, 400) f32
    w25 = params["w25"]      # (2, 400, 300)    bf16
    small = params["small"]  # (2, 4, 400)      f32

    flops = 2 * 2 * B * (in_dim * _H1 + _H1 * _H2 + _H2)
    bytes_accessed = (xu.size * 4 + w14.size * 4 + w25.size * 2
                      + small.size * 4 + B * 2 * 4)

    vmem = pl.BlockSpec(memory_space=pltpu.MemorySpace.VMEM)
    out = pl.pallas_call(
        critic_kernel,
        out_shape=jax.ShapeDtypeStruct((B, 2), jnp.float32),
        in_specs=[vmem, vmem, vmem, vmem],
        out_specs=vmem,
        cost_estimate=pl.CostEstimate(flops=flops, transcendentals=0,
                                      bytes_accessed=bytes_accessed),
    )(xu, w14, w25, small)

    return out[:, 0:1], out[:, 1:2]


# ---------------------------------------------------------------------------
# Params (packed, head-stacked) + pure-JAX reference
# ---------------------------------------------------------------------------

def init_critic_params(key, state_dim, action_dim):
    """nn.Linear-default init (U[-1/sqrt(fan_in), +1/sqrt(fan_in)]), packed:
       w14:   (2, in_dim, 400) f32
       w25:   (2, 400, 300)    bf16  (documented precision choice)
       small: (2, 4, 400)      f32   rows = [b1, b2, w3_row, b3], zero-padded to 400
    Weights stored as (in_features, out_features)."""
    in_dim = state_dim + action_dim
    dims = [(in_dim, _H1), (_H1, _H2), (_H2, 1),
            (in_dim, _H1), (_H1, _H2), (_H2, 1)]
    keys = jax.random.split(key, 2 * len(dims))
    ws, bs = [], []
    for idx, (fan_in, fan_out) in enumerate(dims):
        bound = 1.0 / (float(fan_in) ** 0.5)
        w = jax.random.uniform(keys[2 * idx], (fan_in, fan_out),
                               minval=-bound, maxval=bound, dtype=jnp.float32)
        b = jax.random.uniform(keys[2 * idx + 1], (1, fan_out),
                               minval=-bound, maxval=bound, dtype=jnp.float32)
        ws.append(w)
        bs.append(b)

    def pack_small(b1, b2, w3, b3):
        rows = []
        for t in (b1, b2, w3.T, b3):          # each (1, k), k <= 400
            rows.append(jnp.pad(t, ((0, 0), (0, _H1 - t.shape[1]))))
        return jnp.concatenate(rows, axis=0)  # (4, 400)

    return {
        "w14": jnp.stack([ws[0], ws[3]], axis=0),                       # f32
        "w25": jnp.stack([ws[1], ws[4]], axis=0).astype(jnp.bfloat16),  # bf16
        "small": jnp.stack([pack_small(bs[0], bs[1], ws[2], bs[2]),
                            pack_small(bs[3], bs[4], ws[5], bs[5])],
                           axis=0),                                     # f32
    }


def reference_forward(x, u, params):
    """Plain-JAX reference of Critic.forward using the packed params."""
    xu = jnp.concatenate([x, u], axis=1)

    def head(h):
        w1 = params["w14"][h]
        w2 = params["w25"][h].astype(jnp.float32)
        small = params["small"][h]
        b1 = small[0:1, :]
        b2 = small[1:2, 0:_H2]
        w3 = small[2:3, 0:_H2]
        b3 = small[3:4, 0:1]
        a = jnp.maximum(xu @ w1 + b1, 0.0)
        a = jnp.maximum(a @ w2 + b2, 0.0)
        return a @ w3.T + b3

    return head(0), head(1)


# ---------------------------------------------------------------------------

if __name__ == "__main__":
    state_dim = 4   # from Game.state_dim
    action_dim = 4  # from Game.action_dim
    batch = 2

    key = jax.random.PRNGKey(0)
    k_params, k_x, k_u = jax.random.split(key, 3)

    params = init_critic_params(k_params, state_dim, action_dim)
    x = jax.random.normal(k_x, (batch, state_dim), dtype=jnp.float32)
    u = jax.random.normal(k_u, (batch, action_dim), dtype=jnp.float32)

    q1, q2 = critic_forward(x, u, params)
    q1 = jax.block_until_ready(q1)
    q2 = jax.block_until_ready(q2)

    q1_ref, q2_ref = reference_forward(x, u, params)
    assert q1.shape == (batch, 1) and q2.shape == (batch, 1)
    # f32 activations + f32 accumulation; the only precision delta vs the
    # reference is dot ordering, so the tolerance can be tight.
    assert jnp.allclose(q1, q1_ref, atol=1e-4, rtol=1e-4)
    assert jnp.allclose(q2, q2_ref, atol=1e-4, rtol=1e-4)

    print("KERNEL_OK")
</pallas_src>

<mosaic_0001>
module attributes {stable_mosaic.version = 11 : i64} {
  func.func @critic_kernel(%arg0: memref<2x8xf32, #tpu.memory_space<vmem>>, %arg1: memref<2x8x400xf32, #tpu.memory_space<vmem>>, %arg2: memref<2x400x300xbf16, #tpu.memory_space<vmem>>, %arg3: memref<2x4x400xf32, #tpu.memory_space<vmem>>, %arg4: memref<2x2xf32, #tpu.memory_space<vmem>>) attributes {dimension_semantics = [], scalar_prefetch = 0 : i64, scratch_operands = 0 : i64, tpu.core_type = #tpu.core_type<tc>} {
    %c0 = arith.constant 0 : index
    %c0_0 = arith.constant 0 : index
    %0 = vector.load %arg0[%c0, %c0_0] : memref<2x8xf32, #tpu.memory_space<vmem>>, vector<2x8xf32>
    %c0_1 = arith.constant 0 : index
    %c0_2 = arith.constant 0 : index
    %c0_3 = arith.constant 0 : index
    %1 = vector.load %arg1[%c0_1, %c0_2, %c0_3] : memref<2x8x400xf32, #tpu.memory_space<vmem>>, vector<1x8x400xf32>
    %2 = vector.shape_cast %1 : vector<1x8x400xf32> to vector<8x400xf32>
    %c0_4 = arith.constant 0 : index
    %c0_5 = arith.constant 0 : index
    %c0_6 = arith.constant 0 : index
    %3 = vector.load %arg2[%c0_4, %c0_5, %c0_6] : memref<2x400x300xbf16, #tpu.memory_space<vmem>>, vector<1x400x300xbf16>
    %4 = vector.shape_cast %3 : vector<1x400x300xbf16> to vector<400x300xbf16>
    %5 = arith.extf %4 : vector<400x300xbf16> to vector<400x300xf32>
    %c0_7 = arith.constant 0 : index
    %c0_8 = arith.constant 0 : index
    %c0_9 = arith.constant 0 : index
    %6 = vector.load %arg3[%c0_7, %c0_8, %c0_9] : memref<2x4x400xf32, #tpu.memory_space<vmem>>, vector<1x4x400xf32>
    %7 = vector.shape_cast %6 : vector<1x4x400xf32> to vector<4x400xf32>
    %8 = vector.extract_strided_slice %7 {offsets = [0, 0], sizes = [1, 400], strides = [1, 1]} : vector<4x400xf32> to vector<1x400xf32>
    %9 = vector.extract_strided_slice %7 {offsets = [1, 0], sizes = [1, 300], strides = [1, 1]} : vector<4x400xf32> to vector<1x300xf32>
    %10 = vector.extract_strided_slice %7 {offsets = [2, 0], sizes = [1, 300], strides = [1, 1]} : vector<4x400xf32> to vector<1x300xf32>
    %11 = vector.extract_strided_slice %7 {offsets = [3, 0], sizes = [1, 1], strides = [1, 1]} : vector<4x400xf32> to vector<1x1xf32>
    %cst = arith.constant dense<0.000000e+00> : vector<2x400xf32>
    %12 = tpu.matmul %0, %2, %cst {dimension_numbers = #tpu.dot_dimension_numbers<[1], [0], [0], [1], [0, 0, 1, 1], [], []>} : vector<2x8xf32>, vector<8x400xf32>, vector<2x400xf32> -> vector<2x400xf32>
    %13 = vector.broadcast %8 : vector<1x400xf32> to vector<2x400xf32>
    %14 = arith.addf %12, %13 : vector<2x400xf32>
    %cst_10 = arith.constant 0.000000e+00 : f32
    %15 = vector.broadcast %cst_10 : f32 to vector<2x400xf32>
    %16 = arith.maximumf %14, %15 : vector<2x400xf32>
    %cst_11 = arith.constant dense<0.000000e+00> : vector<2x300xf32>
    %17 = tpu.matmul %16, %5, %cst_11 {dimension_numbers = #tpu.dot_dimension_numbers<[1], [0], [0], [1], [0, 0, 1, 1], [], []>} : vector<2x400xf32>, vector<400x300xf32>, vector<2x300xf32> -> vector<2x300xf32>
    %18 = vector.broadcast %9 : vector<1x300xf32> to vector<2x300xf32>
    %19 = arith.addf %17, %18 : vector<2x300xf32>
    %cst_12 = arith.constant 0.000000e+00 : f32
    %20 = vector.broadcast %cst_12 : f32 to vector<2x300xf32>
    %21 = arith.maximumf %19, %20 : vector<2x300xf32>
    %22 = vector.broadcast %10 : vector<1x300xf32> to vector<2x300xf32>
    %23 = arith.mulf %21, %22 : vector<2x300xf32>
    %cst_13 = arith.constant dense<0.000000e+00> : vector<2xf32>
    %24 = vector.multi_reduction <add>, %23, %cst_13 [1] : vector<2x300xf32> to vector<2xf32>
    %25 = vector.shape_cast %24 : vector<2xf32> to vector<2x1xf32>
    %26 = vector.broadcast %11 : vector<1x1xf32> to vector<2x1xf32>
    %27 = arith.addf %25, %26 : vector<2x1xf32>
    %c0_14 = arith.constant 0 : index
    %c0_15 = arith.constant 0 : index
    %28 = vector.load %arg4[%c0_14, %c0_15] : memref<2x2xf32, #tpu.memory_space<vmem>>, vector<2x1xf32>
    tpu.vector_store %arg4[%c0_14, %c0_15], %27 {strides = array<i32>} : memref<2x2xf32, #tpu.memory_space<vmem>>, vector<2x1xf32>,
    %c1 = arith.constant 1 : index
    %c0_16 = arith.constant 0 : index
    %c0_17 = arith.constant 0 : index
    %29 = vector.load %arg1[%c1, %c0_16, %c0_17] : memref<2x8x400xf32, #tpu.memory_space<vmem>>, vector<1x8x400xf32>
    %30 = vector.shape_cast %29 : vector<1x8x400xf32> to vector<8x400xf32>
    %c1_18 = arith.constant 1 : index
    %c0_19 = arith.constant 0 : index
    %c0_20 = arith.constant 0 : index
    %31 = vector.load %arg2[%c1_18, %c0_19, %c0_20] : memref<2x400x300xbf16, #tpu.memory_space<vmem>>, vector<1x400x300xbf16>
    %32 = vector.shape_cast %31 : vector<1x400x300xbf16> to vector<400x300xbf16>
    %33 = arith.extf %32 : vector<400x300xbf16> to vector<400x300xf32>
    %c1_21 = arith.constant 1 : index
    %c0_22 = arith.constant 0 : index
    %c0_23 = arith.constant 0 : index
    %34 = vector.load %arg3[%c1_21, %c0_22, %c0_23] : memref<2x4x400xf32, #tpu.memory_space<vmem>>, vector<1x4x400xf32>
    %35 = vector.shape_cast %34 : vector<1x4x400xf32> to vector<4x400xf32>
    %36 = vector.extract_strided_slice %35 {offsets = [0, 0], sizes = [1, 400], strides = [1, 1]} : vector<4x400xf32> to vector<1x400xf32>
    %37 = vector.extract_strided_slice %35 {offsets = [1, 0], sizes = [1, 300], strides = [1, 1]} : vector<4x400xf32> to vector<1x300xf32>
    %38 = vector.extract_strided_slice %35 {offsets = [2, 0], sizes = [1, 300], strides = [1, 1]} : vector<4x400xf32> to vector<1x300xf32>
    %39 = vector.extract_strided_slice %35 {offsets = [3, 0], sizes = [1, 1], strides = [1, 1]} : vector<4x400xf32> to vector<1x1xf32>
    %cst_24 = arith.constant dense<0.000000e+00> : vector<2x400xf32>
    %40 = tpu.matmul %0, %30, %cst_24 {dimension_numbers = #tpu.dot_dimension_numbers<[1], [0], [0], [1], [0, 0, 1, 1], [], []>} : vector<2x8xf32>, vector<8x400xf32>, vector<2x400xf32> -> vector<2x400xf32>
    %41 = vector.broadcast %36 : vector<1x400xf32> to vector<2x400xf32>
    %42 = arith.addf %40, %41 : vector<2x400xf32>
    %cst_25 = arith.constant 0.000000e+00 : f32
    %43 = vector.broadcast %cst_25 : f32 to vector<2x400xf32>
    %44 = arith.maximumf %42, %43 : vector<2x400xf32>
    %cst_26 = arith.constant dense<0.000000e+00> : vector<2x300xf32>
    %45 = tpu.matmul %44, %33, %cst_26 {dimension_numbers = #tpu.dot_dimension_numbers<[1], [0], [0], [1], [0, 0, 1, 1], [], []>} : vector<2x400xf32>, vector<400x300xf32>, vector<2x300xf32> -> vector<2x300xf32>
    %46 = vector.broadcast %37 : vector<1x300xf32> to vector<2x300xf32>
    %47 = arith.addf %45, %46 : vector<2x300xf32>
    %cst_27 = arith.constant 0.000000e+00 : f32
    %48 = vector.broadcast %cst_27 : f32 to vector<2x300xf32>
    %49 = arith.maximumf %47, %48 : vector<2x300xf32>
    %50 = vector.broadcast %38 : vector<1x300xf32> to vector<2x300xf32>
    %51 = arith.mulf %49, %50 : vector<2x300xf32>
    %cst_28 = arith.constant dense<0.000000e+00> : vector<2xf32>
    %52 = vector.multi_reduction <add>, %51, %cst_28 [1] : vector<2x300xf32> to vector<2xf32>
    %53 = vector.shape_cast %52 : vector<2xf32> to vector<2x1xf32>
    %54 = vector.broadcast %39 : vector<1x1xf32> to vector<2x1xf32>
    %55 = arith.addf %53, %54 : vector<2x1xf32>
    %c0_29 = arith.constant 0 : index
    %c1_30 = arith.constant 1 : index
    %56 = vector.load %arg4[%c0_29, %c1_30] : memref<2x2xf32, #tpu.memory_space<vmem>>, vector<2x1xf32>
    tpu.vector_store %arg4[%c0_29, %c1_30], %55 {strides = array<i32>} : memref<2x2xf32, #tpu.memory_space<vmem>>, vector<2x1xf32>,
    return
  }
}

</mosaic_0001>

<llo_original>
// kernel: tpu_custom_call.1
$region0: #{tpu_custom_call.1}
  #allocation0 [shape = 'u32[]', space=smem, size = 0x4, offset = 0x4, fixed_abs, tag = 'smem constant byte address 0x4 - core index']
  #allocation1 [shape = 'u32[144,128]{1,0:T(1,128)}', space=vmem, size = 0x12000, scoped, tag = 'internal scratch']
  %s0 = inlined_call_operand.hbm [shape: f32[2,8], index: 0, kind: input, shape index: {}]
  %s1 = inlined_call_operand.hbm [shape: f32[2,8,400], index: 1, kind: input, shape index: {}]
  %s2 = inlined_call_operand.hbm [shape: bf16[2,400,300], index: 2, kind: input, shape index: {}]
  %s3 = inlined_call_operand.hbm [shape: f32[2,4,400], index: 3, kind: input, shape index: {}]
  %s4 = inlined_call_operand.hbm [shape: f32[2,2], index: 4, kind: output, shape index: {}]
  %s5 = sld [smem:[#allocation0]]
  $region42: #{tpu_custom_call.1} parent=0
    _
  %s7 = ssub.s32 1, %s5
  %s8 = scalar_select 0, %s7, %s5
  $region1: #{tpu_custom_call.1} parent=0
    #allocation2 [shape = 'u8[1024]{0}', space=vmem, size = 0x400, scoped, tag = 'input window, operand 0, single buffered']
    #allocation3 [shape = 's32[1]{0}', space=sflag, size = 0x4, scoped, tag = 'scoped memory for tpu_custom_call.1']
    #allocation4 [shape = 's32[1]{0}', space=sflag, size = 0x4, scoped, tag = 'scoped memory for tpu_custom_call.1']
    #allocation5 [shape = 'u8[32768]{0}', space=vmem, size = 0x8000, scoped, tag = 'input window, operand 1, single buffered']
    #allocation6 [shape = 's32[1]{0}', space=sflag, size = 0x4, scoped, tag = 'scoped memory for tpu_custom_call.1']
    #allocation7 [shape = 'u8[614400]{0}', space=vmem, size = 0x96000, scoped, tag = 'input window, operand 2, single buffered']
    #allocation8 [shape = 'u8[16384]{0}', space=vmem, size = 0x4000, scoped, tag = 'input window, operand 3, single buffered']
    #allocation9 [shape = 's32[1]{0}', space=sflag, size = 0x4, scoped, tag = 'scoped memory for tpu_custom_call.1']
    #allocation10 [shape = 'u8[1024]{0}', space=vmem, size = 0x400, scoped, tag = 'output window, operand 0, single buffered']
    %9 = vsyncpa [#allocation3], 0
    %10 = vsyncpa [#allocation6], 0
    %11 = vsyncpa [#allocation9], 0
    %12 = vsyncpa [#allocation4], 0
    // Predicated region
    $region2: #{tpu_custom_call.1} parent=1 // pred_check
      _
    $region3: #{tpu_custom_call.1} parent=1 // pred_check_branch
      %14 = sbr.rel (0) target = $region5
    $region4: #{tpu_custom_call.1} parent=1 // pred_region
      %s16 = ssub.s32 32, 32
      %17 = vsyncadd [#allocation3], %s16
      %s19 = sshll.u32 [#allocation2], 4
      %s20 = int_to_ptr.vmem [resolvable:$true] %s19
      %22 = dma.hbm_to_vmem [thread:$0]  %s0, 32, %s20, [#allocation3]
    $region5: #{tpu_custom_call.1} parent=1 // pred_fallthru
      _
    // Predicated region
    $region6: #{tpu_custom_call.1} parent=1 // pred_check
      _
    $region7: #{tpu_custom_call.1} parent=1 // pred_check_branch
      %24 = sbr.rel (0) target = $region9
    $region8: #{tpu_custom_call.1} parent=1 // pred_region
      %s26 = ssub.s32 1024, 1024
      %27 = vsyncadd [#allocation6], %s26
      %s28 = sshll.u32 [#allocation5], 4
      %s29 = int_to_ptr.vmem [resolvable:$true] %s28
      %34 = dma.hbm_to_vmem [thread:$0]  %s1, 1024, %s29, [#allocation6], 512, 512, 32
    $region9: #{tpu_custom_call.1} parent=1 // pred_fallthru
      _
    // Predicated region
    $region10: #{tpu_custom_call.1} parent=1 // pred_check
      _
    $region11: #{tpu_custom_call.1} parent=1 // pred_check_branch
      %36 = sbr.rel (0) target = $region13
    $region12: #{tpu_custom_call.1} parent=1 // pred_region
      %s38 = ssub.s32 19200, 19200
      %39 = vsyncadd [#allocation6], %s38
      %s40 = sshll.u32 [#allocation7], 4
      %s41 = int_to_ptr.vmem [resolvable:$true] %s40
      %46 = dma.hbm_to_vmem [thread:$0]  %s2, 19200, %s41, [#allocation6], 192, 192, 12
    $region13: #{tpu_custom_call.1} parent=1 // pred_fallthru
      _
    // Predicated region
    $region14: #{tpu_custom_call.1} parent=1 // pred_check
      _
    $region15: #{tpu_custom_call.1} parent=1 // pred_check_branch
      %48 = sbr.rel (0) target = $region17
    $region16: #{tpu_custom_call.1} parent=1 // pred_region
      %s50 = ssub.s32 512, 512
      %51 = vsyncadd [#allocation9], %s50
      %s52 = sshll.u32 [#allocation8], 4
      %s53 = int_to_ptr.vmem [resolvable:$true] %s52
      %58 = dma.hbm_to_vmem [thread:$0]  %s3, 512, %s53, [#allocation9], 256, 256, 16
    $region17: #{tpu_custom_call.1} parent=1 // pred_fallthru
      _
    // Predicated region
    $region18: #{tpu_custom_call.1} parent=1 // pred_check
      _
    $region19: #{tpu_custom_call.1} parent=1 // pred_check_branch
      %60 = sbr.rel (0) target = $region21
    $region20: #{tpu_custom_call.1} parent=1 // pred_region
      %61 = dma.done [#allocation3], 32
    $region21: #{tpu_custom_call.1} parent=1 // pred_fallthru
      _
    // Predicated region
    $region22: #{tpu_custom_call.1} parent=1 // pred_check
      _
    $region23: #{tpu_custom_call.1} parent=1 // pred_check_branch
      %63 = sbr.rel (0) target = $region25
    $region24: #{tpu_custom_call.1} parent=1 // pred_region
      %64 = dma.done [#allocation6], 1024
    $region25: #{tpu_custom_call.1} parent=1 // pred_fallthru
      _
    // Predicated region
    $region26: #{tpu_custom_call.1} parent=1 // pred_check
      _
    $region27: #{tpu_custom_call.1} parent=1 // pred_check_branch
      %66 = sbr.rel (0) target = $region29
    $region28: #{tpu_custom_call.1} parent=1 // pred_region
      %67 = dma.done [#allocation6], 19200
    $region29: #{tpu_custom_call.1} parent=1 // pred_fallthru
      _
    // Predicated region
    $region30: #{tpu_custom_call.1} parent=1 // pred_check
      _
    $region31: #{tpu_custom_call.1} parent=1 // pred_check_branch
      %69 = sbr.rel (0) target = $region33
    $region32: #{tpu_custom_call.1} parent=1 // pred_region
      %70 = dma.done [#allocation9], 512
    $region33: #{tpu_custom_call.1} parent=1 // pred_fallthru
      _
    %v71 = vld [vmem:[#allocation2] sm:$0x3]
    %v72 = vld [vmem:[#allocation5] sm:$0xff]
    %v73 = vld [vmem:[#allocation5 + $0x8] sm:$0xff]
    %v74 = vld [vmem:[#allocation5 + $0x10] sm:$0xff]
    %v75 = vld [vmem:[#allocation5 + $0x18] sm:$0xff]
    %v76 = vld [vmem:[#allocation7] sm:$0xff]
    %v77 = vld [vmem:[#allocation7 + $0x8] sm:$0xf]
    %v78 = vld [vmem:[#allocation7 + $0xc] sm:$0xff]
    %v79 = vld [vmem:[#allocation7 + $0x14] sm:$0xf]
    %v80 = vld [vmem:[#allocation7 + $0x18] sm:$0xff]
    %v81 = vld [vmem:[#allocation7 + $0x20] sm:$0xf]
    %v82 = vld [vmem:[#allocation7 + $0x24] sm:$0xff]
    %v83 = vld [vmem:[#allocation7 + $0x2c] sm:$0xf]
    %v84 = vld [vmem:[#allocation7 + $0x30] sm:$0xff]
    %v85 = vld [vmem:[#allocation7 + $0x38] sm:$0xf]
    %v86 = vld [vmem:[#allocation7 + $0x3c] sm:$0xff]
    %v87 = vld [vmem:[#allocation7 + $0x44] sm:$0xf]
    %v88 = vld [vmem:[#allocation7 + $0x48] sm:$0xff]
    %v89 = vld [vmem:[#allocation7 + $0x50] sm:$0xf]
    %v90 = vld [vmem:[#allocation7 + $0x54] sm:$0xff]
    %v91 = vld [vmem:[#allocation7 + $0x5c] sm:$0xf]
    %v92 = vld [vmem:[#allocation7 + $0x60] sm:$0xff]
    %v93 = vld [vmem:[#allocation7 + $0x68] sm:$0xf]
    %v94 = vld [vmem:[#allocation7 + $0x6c] sm:$0xff]
    %v95 = vld [vmem:[#allocation7 + $0x74] sm:$0xf]
    %v96 = vld [vmem:[#allocation7 + $0x78] sm:$0xff]
    %v97 = vld [vmem:[#allocation7 + $0x80] sm:$0xf]
    %v98 = vld [vmem:[#allocation7 + $0x84] sm:$0xff]
    %v99 = vld [vmem:[#allocation7 + $0x8c] sm:$0xf]
    %v100 = vld [vmem:[#allocation7 + $0x90] sm:$0xff]
    %v101 = vld [vmem:[#allocation7 + $0x98] sm:$0xf]
    %v102 = vld [vmem:[#allocation7 + $0x9c] sm:$0xff]
    %v103 = vld [vmem:[#allocation7 + $0xa4] sm:$0xf]
    %v104 = vld [vmem:[#allocation7 + $0xa8] sm:$0xff]
    %v105 = vld [vmem:[#allocation7 + $0xb0] sm:$0xf]
    %v106 = vld [vmem:[#allocation7 + $0xb4] sm:$0xff]
    %v107 = vld [vmem:[#allocation7 + $0xbc] sm:$0xf]
    %v108 = vld [vmem:[#allocation7 + $0xc0] sm:$0xff]
    %v109 = vld [vmem:[#allocation7 + $0xc8] sm:$0xf]
    %v110 = vld [vmem:[#allocation7 + $0xcc] sm:$0xff]
    %v111 = vld [vmem:[#allocation7 + $0xd4] sm:$0xf]
    %v112 = vld [vmem:[#allocation7 + $0xd8] sm:$0xff]
    %v113 = vld [vmem:[#allocation7 + $0xe0] sm:$0xf]
    %v114 = vld [vmem:[#allocation7 + $0xe4] sm:$0xff]
    %v115 = vld [vmem:[#allocation7 + $0xec] sm:$0xf]
    %v116 = vld [vmem:[#allocation7 + $0xf0] sm:$0xff]
    %v117 = vld [vmem:[#allocation7 + $0xf8] sm:$0xf]
    %v118 = vld [vmem:[#allocation7 + $0xfc] sm:$0xff]
    %v119 = vld [vmem:[#allocation7 + $0x104] sm:$0xf]
    %v120 = vld [vmem:[#allocation7 + $0x108] sm:$0xff]
    %v121 = vld [vmem:[#allocation7 + $0x110] sm:$0xf]
    %v122 = vld [vmem:[#allocation7 + $0x114] sm:$0xff]
    %v123 = vld [vmem:[#allocation7 + $0x11c] sm:$0xf]
    %v124 = vld [vmem:[#allocation7 + $0x120] sm:$0xff]
    %v125 = vld [vmem:[#allocation7 + $0x128] sm:$0xf]
    %v126 = vld [vmem:[#allocation7 + $0x12c] sm:$0xff]
    %v127 = vld [vmem:[#allocation7 + $0x134] sm:$0xf]
    %v128 = vld [vmem:[#allocation7 + $0x138] sm:$0xff]
    %v129 = vld [vmem:[#allocation7 + $0x140] sm:$0xf]
    %v130 = vld [vmem:[#allocation7 + $0x144] sm:$0xff]
    %v131 = vld [vmem:[#allocation7 + $0x14c] sm:$0xf]
    %v132 = vld [vmem:[#allocation7 + $0x150] sm:$0xff]
    %v133 = vld [vmem:[#allocation7 + $0x158] sm:$0xf]
    %v134 = vld [vmem:[#allocation7 + $0x15c] sm:$0xff]
    %v135 = vld [vmem:[#allocation7 + $0x164] sm:$0xf]
    %v136 = vld [vmem:[#allocation7 + $0x168] sm:$0xff]
    %v137 = vld [vmem:[#allocation7 + $0x170] sm:$0xf]
    %v138 = vld [vmem:[#allocation7 + $0x174] sm:$0xff]
    %v139 = vld [vmem:[#allocation7 + $0x17c] sm:$0xf]
    %v140 = vld [vmem:[#allocation7 + $0x180] sm:$0xff]
    %v141 = vld [vmem:[#allocation7 + $0x188] sm:$0xf]
    %v142 = vld [vmem:[#allocation7 + $0x18c] sm:$0xff]
    %v143 = vld [vmem:[#allocation7 + $0x194] sm:$0xf]
    %v144 = vld [vmem:[#allocation7 + $0x198] sm:$0xff]
    %v145 = vld [vmem:[#allocation7 + $0x1a0] sm:$0xf]
    %v146 = vld [vmem:[#allocation7 + $0x1a4] sm:$0xff]
    %v147 = vld [vmem:[#allocation7 + $0x1ac] sm:$0xf]
    %v148 = vld [vmem:[#allocation7 + $0x1b0] sm:$0xff]
    %v149 = vld [vmem:[#allocation7 + $0x1b8] sm:$0xf]
    %v150 = vld [vmem:[#allocation7 + $0x1bc] sm:$0xff]
    %v151 = vld [vmem:[#allocation7 + $0x1c4] sm:$0xf]
    %v152 = vld [vmem:[#allocation7 + $0x1c8] sm:$0xff]
    %v153 = vld [vmem:[#allocation7 + $0x1d0] sm:$0xf]
    %v154 = vld [vmem:[#allocation7 + $0x1d4] sm:$0xff]
    %v155 = vld [vmem:[#allocation7 + $0x1dc] sm:$0xf]
    %v156 = vld [vmem:[#allocation7 + $0x1e0] sm:$0xff]
    %v157 = vld [vmem:[#allocation7 + $0x1e8] sm:$0xf]
    %v158 = vld [vmem:[#allocation7 + $0x1ec] sm:$0xff]
    %v159 = vld [vmem:[#allocation7 + $0x1f4] sm:$0xf]
    %v160 = vld [vmem:[#allocation7 + $0x1f8] sm:$0xff]
    %v161 = vld [vmem:[#allocation7 + $0x200] sm:$0xf]
    %v162 = vld [vmem:[#allocation7 + $0x204] sm:$0xff]
    %v163 = vld [vmem:[#allocation7 + $0x20c] sm:$0xf]
    %v164 = vld [vmem:[#allocation7 + $0x210] sm:$0xff]
    %v165 = vld [vmem:[#allocation7 + $0x218] sm:$0xf]
    %v166 = vld [vmem:[#allocation7 + $0x21c] sm:$0xff]
    %v167 = vld [vmem:[#allocation7 + $0x224] sm:$0xf]
    %v168 = vld [vmem:[#allocation7 + $0x228] sm:$0xff]
    %v169 = vld [vmem:[#allocation7 + $0x230] sm:$0xf]
    %v170 = vld [vmem:[#allocation7 + $0x234] sm:$0xff]
    %v171 = vld [vmem:[#allocation7 + $0x23c] sm:$0xf]
    %v172 = vld [vmem:[#allocation7 + $0x240] sm:$0xff]
    %v173 = vld [vmem:[#allocation7 + $0x248] sm:$0xf]
    %v174 = vld [vmem:[#allocation7 + $0x24c] sm:$0xff]
    %v175 = vld [vmem:[#allocation7 + $0x254] sm:$0xf]
    %v176 = vunpack.c.l.bf16 %v76
    %v177 = vunpack.c.h.bf16 %v76
    %v178 = vunpack.c.l.bf16 %v77
    %v179 = vunpack.c.l.bf16 %v78
    %v180 = vunpack.c.h.bf16 %v78
    %v181 = vunpack.c.l.bf16 %v79
    %v182 = vunpack.c.l.bf16 %v80
    %v183 = vunpack.c.h.bf16 %v80
    %v184 = vunpack.c.l.bf16 %v81
    %v185 = vunpack.c.l.bf16 %v82
    %v186 = vunpack.c.h.bf16 %v82
    %v187 = vunpack.c.l.bf16 %v83
    %v188 = vunpack.c.l.bf16 %v84
    %v189 = vunpack.c.h.bf16 %v84
    %v190 = vunpack.c.l.bf16 %v85
    %v191 = vunpack.c.l.bf16 %v86
    %v192 = vunpack.c.h.bf16 %v86
    %v193 = vunpack.c.l.bf16 %v87
    %v194 = vunpack.c.l.bf16 %v88
    %v195 = vunpack.c.h.bf16 %v88
    %v196 = vunpack.c.l.bf16 %v89
    %v197 = vunpack.c.l.bf16 %v90
    %v198 = vunpack.c.h.bf16 %v90
    %v199 = vunpack.c.l.bf16 %v91
    %v200 = vunpack.c.l.bf16 %v92
    %v201 = vunpack.c.h.bf16 %v92
    %v202 = vunpack.c.l.bf16 %v93
    %v203 = vunpack.c.l.bf16 %v94
    %v204 = vunpack.c.h.bf16 %v94
    %v205 = vunpack.c.l.bf16 %v95
    %v206 = vunpack.c.l.bf16 %v96
    %v207 = vunpack.c.h.bf16 %v96
    %v208 = vunpack.c.l.bf16 %v97
    %v209 = vunpack.c.l.bf16 %v98
    %v210 = vunpack.c.h.bf16 %v98
    %v211 = vunpack.c.l.bf16 %v99
    %v212 = vunpack.c.l.bf16 %v100
    %v213 = vunpack.c.h.bf16 %v100
    %v214 = vunpack.c.l.bf16 %v101
    %v215 = vunpack.c.l.bf16 %v102
    %v216 = vunpack.c.h.bf16 %v102
    %v217 = vunpack.c.l.bf16 %v103
    %v218 = vunpack.c.l.bf16 %v104
    %v219 = vunpack.c.h.bf16 %v104
    %v220 = vunpack.c.l.bf16 %v105
    %v221 = vunpack.c.l.bf16 %v106
    %v222 = vunpack.c.h.bf16 %v106
    %v223 = vunpack.c.l.bf16 %v107
    %v224 = vunpack.c.l.bf16 %v108
    %v225 = vunpack.c.h.bf16 %v108
    %v226 = vunpack.c.l.bf16 %v109
    %v227 = vunpack.c.l.bf16 %v110
    %v228 = vunpack.c.h.bf16 %v110
    %v229 = vunpack.c.l.bf16 %v111
    %v230 = vunpack.c.l.bf16 %v112
    %v231 = vunpack.c.h.bf16 %v112
    %v232 = vunpack.c.l.bf16 %v113
    %v233 = vunpack.c.l.bf16 %v114
    %v234 = vunpack.c.h.bf16 %v114
    %v235 = vunpack.c.l.bf16 %v115
    %v236 = vunpack.c.l.bf16 %v116
    %v237 = vunpack.c.h.bf16 %v116
    %v238 = vunpack.c.l.bf16 %v117
    %v239 = vunpack.c.l.bf16 %v118
    %v240 = vunpack.c.h.bf16 %v118
    %v241 = vunpack.c.l.bf16 %v119
    %v242 = vunpack.c.l.bf16 %v120
    %v243 = vunpack.c.h.bf16 %v120
    %v244 = vunpack.c.l.bf16 %v121
    %v245 = vunpack.c.l.bf16 %v122
    %v246 = vunpack.c.h.bf16 %v122
    %v247 = vunpack.c.l.bf16 %v123
    %v248 = vunpack.c.l.bf16 %v124
    %v249 = vunpack.c.h.bf16 %v124
    %v250 = vunpack.c.l.bf16 %v125
    %v251 = vunpack.c.l.bf16 %v126
    %v252 = vunpack.c.h.bf16 %v126
    %v253 = vunpack.c.l.bf16 %v127
    %v254 = vunpack.c.l.bf16 %v128
    %v255 = vunpack.c.h.bf16 %v128
    %v256 = vunpack.c.l.bf16 %v129
    %v257 = vunpack.c.l.bf16 %v130
    %v258 = vunpack.c.h.bf16 %v130
    %v259 = vunpack.c.l.bf16 %v131
    %v260 = vunpack.c.l.bf16 %v132
    %v261 = vunpack.c.h.bf16 %v132
    %v262 = vunpack.c.l.bf16 %v133
    %v263 = vunpack.c.l.bf16 %v134
    %v264 = vunpack.c.h.bf16 %v134
    %v265 = vunpack.c.l.bf16 %v135
    %v266 = vunpack.c.l.bf16 %v136
    %v267 = vunpack.c.h.bf16 %v136
    %v268 = vunpack.c.l.bf16 %v137
    %v269 = vunpack.c.l.bf16 %v138
    %v270 = vunpack.c.h.bf16 %v138
    %v271 = vunpack.c.l.bf16 %v139
    %v272 = vunpack.c.l.bf16 %v140
    %v273 = vunpack.c.h.bf16 %v140
    %v274 = vunpack.c.l.bf16 %v141
    %v275 = vunpack.c.l.bf16 %v142
    %v276 = vunpack.c.h.bf16 %v142
    %v277 = vunpack.c.l.bf16 %v143
    %v278 = vunpack.c.l.bf16 %v144
    %v279 = vunpack.c.h.bf16 %v144
    %v280 = vunpack.c.l.bf16 %v145
    %v281 = vunpack.c.l.bf16 %v146
    %v282 = vunpack.c.h.bf16 %v146
    %v283 = vunpack.c.l.bf16 %v147
    %v284 = vunpack.c.l.bf16 %v148
    %v285 = vunpack.c.h.bf16 %v148
    %v286 = vunpack.c.l.bf16 %v149
    %v287 = vunpack.c.l.bf16 %v150
    %v288 = vunpack.c.h.bf16 %v150
    %v289 = vunpack.c.l.bf16 %v151
    %v290 = vunpack.c.l.bf16 %v152
    %v291 = vunpack.c.h.bf16 %v152
    %v292 = vunpack.c.l.bf16 %v153
    %v293 = vunpack.c.l.bf16 %v154
    %v294 = vunpack.c.h.bf16 %v154
    %v295 = vunpack.c.l.bf16 %v155
    %v296 = vunpack.c.l.bf16 %v156
    %v297 = vunpack.c.h.bf16 %v156
    %v298 = vunpack.c.l.bf16 %v157
    %v299 = vunpack.c.l.bf16 %v158
    %v300 = vunpack.c.h.bf16 %v158
    %v301 = vunpack.c.l.bf16 %v159
    %v302 = vunpack.c.l.bf16 %v160
    %v303 = vunpack.c.h.bf16 %v160
    %v304 = vunpack.c.l.bf16 %v161
    %v305 = vunpack.c.l.bf16 %v162
    %v306 = vunpack.c.h.bf16 %v162
    %v307 = vunpack.c.l.bf16 %v163
    %v308 = vunpack.c.l.bf16 %v164
    %v309 = vunpack.c.h.bf16 %v164
    %v310 = vunpack.c.l.bf16 %v165
    %v311 = vunpack.c.l.bf16 %v166
    %v312 = vunpack.c.h.bf16 %v166
    %v313 = vunpack.c.l.bf16 %v167
    %v314 = vunpack.c.l.bf16 %v168
    %v315 = vunpack.c.h.bf16 %v168
    %v316 = vunpack.c.l.bf16 %v169
    %v317 = vunpack.c.l.bf16 %v170
    %v318 = vunpack.c.h.bf16 %v170
    %v319 = vunpack.c.l.bf16 %v171
    %v320 = vunpack.c.l.bf16 %v172
    %v321 = vunpack.c.h.bf16 %v172
    %v322 = vunpack.c.l.bf16 %v173
    %v323 = vunpack.c.l.bf16 %v174
    %v324 = vunpack.c.h.bf16 %v174
    %v325 = vunpack.c.l.bf16 %v175
    %v326 = vld [vmem:[#allocation8] sm:$0xff]
    %v327 = vld [vmem:[#allocation8 + $0x8] sm:$0xff]
    %v330 = vlaneseq
    %v331 = vshrl.u32 %v330, 7
    %v332 = vsub.s32 0, %v331
    %v333 = vrot.slane %v326, %v332
    %v334 = vlaneseq
    %v335 = vshrl.u32 %v334, 7
    %v336 = vsub.s32 4, %v335
    %v337 = vrot.slane %v326, %v336
    %v338 = vlaneseq
    %v339 = vshrl.u32 %v338, 7
    %v340 = vsub.s32 0, %v339
    %v341 = vrot.slane %v327, %v340
    %v342 = vlaneseq
    %v343 = vshrl.u32 %v342, 7
    %v344 = vsub.s32 4, %v343
    %v345 = vrot.slane %v327, %v344
    %v350 = vlaneseq
    %v351 = vshrl.u32 %v350, 7
    %v352 = vsub.s32 0, %v351
    %v353 = vrot.slane %v333, %v352
    %v354 = vlaneseq
    %v355 = vshrl.u32 %v354, 7
    %v356 = vsub.s32 0, %v355
    %v357 = vrot.slane %v337, %v356
    %v358 = vlaneseq
    %v359 = vshrl.u32 %v358, 7
    %v360 = vsub.s32 0, %v359
    %v361 = vrot.slane %v341, %v360
    %v362 = vlaneseq
    %v363 = vshrl.u32 %v362, 7
    %v364 = vsub.s32 0, %v363
    %v365 = vrot.slane %v345, %v364
    %vm366 = vcmask 64512
    %v368 = vsel %vm366, %v71, 0
    %370 = vmatprep.subr.mxu0 %v73
    %371 = vmatpush1.msra.mxu0 %v72
    %372 = vmatprep.subr.mxu0 0.0
    %373 = vmatpush1.msra.mxu0 0.0
    %374 = vmatprep.subr.mxu0 0.0
    %375 = vmatpush1.msra.mxu0 0.0
    %376 = vmatprep.subr.mxu0 0.0
    %377 = vmatpush1.msra.mxu0 0.0
    %378 = vmatprep.subr.mxu0 0.0
    %379 = vmatpush1.msra.mxu0 0.0
    %380 = vmatprep.subr.mxu0 0.0
    %381 = vmatpush1.msra.mxu0 0.0
    %382 = vmatprep.subr.mxu0 0.0
    %383 = vmatpush1.msra.mxu0 0.0
    %384 = vmatprep.subr.mxu0 0.0
    %385 = vmatpush1.msra.mxu0 0.0
    %386 = vmatprep.subr.mxu0 0.0
    %387 = vmatpush1.msra.mxu0 0.0
    %388 = vmatprep.subr.mxu0 0.0
    %389 = vmatpush1.msra.mxu0 0.0
    %390 = vmatprep.subr.mxu0 0.0
    %391 = vmatpush1.msra.mxu0 0.0
    %392 = vmatprep.subr.mxu0 0.0
    %393 = vmatpush1.msra.mxu0 0.0
    %394 = vmatprep.subr.mxu0 0.0
    %395 = vmatpush1.msra.mxu0 0.0
    %396 = vmatprep.subr.mxu0 0.0
    %397 = vmatpush1.msra.mxu0 0.0
    %398 = vmatprep.subr.mxu0 0.0
    %399 = vmatpush1.msra.mxu0 0.0
    %400 = vmatprep.subr.mxu0 0.0
    %401 = vmatpush1.msra.mxu0 0.0
    %402 = vmatprep.subr.mxu0 0.0
    %403 = vmatpush1.msra.mxu0 0.0
    %404 = vmatprep.subr.mxu0 0.0
    %405 = vmatpush1.msra.mxu0 0.0
    %406 = vmatprep.subr.mxu0 0.0
    %407 = vmatpush1.msra.mxu0 0.0
    %408 = vmatprep.subr.mxu0 0.0
    %409 = vmatpush1.msra.mxu0 0.0
    %410 = vmatprep.subr.mxu0 0.0
    %411 = vmatpush1.msra.mxu0 0.0
    %412 = vmatprep.subr.mxu0 0.0
    %413 = vmatpush1.msra.mxu0 0.0
    %414 = vmatprep.subr.mxu0 0.0
    %415 = vmatpush1.msra.mxu0 0.0
    %416 = vmatprep.subr.mxu0 0.0
    %417 = vmatpush1.msra.mxu0 0.0
    %418 = vmatprep.subr.mxu0 0.0
    %419 = vmatpush1.msra.mxu0 0.0
    %420 = vmatprep.subr.mxu0 0.0
    %421 = vmatpush1.msra.mxu0 0.0
    %422 = vmatprep.subr.mxu0 0.0
    %423 = vmatpush1.msra.mxu0 0.0
    %424 = vmatprep.subr.mxu0 0.0
    %425 = vmatpush1.msra.mxu0 0.0
    %426 = vmatprep.subr.mxu0 0.0
    %427 = vmatpush1.msra.mxu0 0.0
    %428 = vmatprep.subr.mxu0 0.0
    %429 = vmatpush1.msra.mxu0 0.0
    %430 = vmatprep.subr.mxu0 0.0
    %431 = vmatpush1.msra.mxu0 0.0
    %432 = vmatprep.subr.mxu0 0.0
    %433 = vmatpush1.msra.mxu0 0.0
    %434 = vmatprep.mubr.f32.mxu0 0.0
    %435 = vmatmul.mubr.f32.gmra.mrb[0].mxu0 %v368
    %v436 = vpop.f32.mrb[0].mxu0
    %v437 = vadd.f32 %v353, %v436
    %v438 = vpop.f32.mrb[0].mxu0
    %v439 = vadd.f32 %v357, %v438
    %440 = vdwg.mxu0
    %441 = vmatprep.subr.mxu0 %v75
    %442 = vmatpush1.msra.mxu0 %v74
    %443 = vmatprep.subr.mxu0 0.0
    %444 = vmatpush1.msra.mxu0 0.0
    %445 = vmatprep.subr.mxu0 0.0
    %446 = vmatpush1.msra.mxu0 0.0
    %447 = vmatprep.subr.mxu0 0.0
    %448 = vmatpush1.msra.mxu0 0.0
    %449 = vmatprep.subr.mxu0 0.0
    %450 = vmatpush1.msra.mxu0 0.0
    %451 = vmatprep.subr.mxu0 0.0
    %452 = vmatpush1.msra.mxu0 0.0
    %453 = vmatprep.subr.mxu0 0.0
    %454 = vmatpush1.msra.mxu0 0.0
    %455 = vmatprep.subr.mxu0 0.0
    %456 = vmatpush1.msra.mxu0 0.0
    %457 = vmatprep.subr.mxu0 0.0
    %458 = vmatpush1.msra.mxu0 0.0
    %459 = vmatprep.subr.mxu0 0.0
    %460 = vmatpush1.msra.mxu0 0.0
    %461 = vmatprep.subr.mxu0 0.0
    %462 = vmatpush1.msra.mxu0 0.0
    %463 = vmatprep.subr.mxu0 0.0
    %464 = vmatpush1.msra.mxu0 0.0
    %465 = vmatprep.subr.mxu0 0.0
    %466 = vmatpush1.msra.mxu0 0.0
    %467 = vmatprep.subr.mxu0 0.0
    %468 = vmatpush1.msra.mxu0 0.0
    %469 = vmatprep.subr.mxu0 0.0
    %470 = vmatpush1.msra.mxu0 0.0
    %471 = vmatprep.subr.mxu0 0.0
    %472 = vmatpush1.msra.mxu0 0.0
    %473 = vmatprep.subr.mxu0 0.0
    %474 = vmatpush1.msra.mxu0 0.0
    %475 = vmatprep.subr.mxu0 0.0
    %476 = vmatpush1.msra.mxu0 0.0
    %477 = vmatprep.subr.mxu0 0.0
    %478 = vmatpush1.msra.mxu0 0.0
    %479 = vmatprep.subr.mxu0 0.0
    %480 = vmatpush1.msra.mxu0 0.0
    %481 = vmatprep.subr.mxu0 0.0
    %482 = vmatpush1.msra.mxu0 0.0
    %483 = vmatprep.subr.mxu0 0.0
    %484 = vmatpush1.msra.mxu0 0.0
    %485 = vmatprep.subr.mxu0 0.0
    %486 = vmatpush1.msra.mxu0 0.0
    %487 = vmatprep.subr.mxu0 0.0
    %488 = vmatpush1.msra.mxu0 0.0
    %489 = vmatprep.subr.mxu0 0.0
    %490 = vmatpush1.msra.mxu0 0.0
    %491 = vmatprep.subr.mxu0 0.0
    %492 = vmatpush1.msra.mxu0 0.0
    %493 = vmatprep.subr.mxu0 0.0
    %494 = vmatpush1.msra.mxu0 0.0
    %495 = vmatprep.subr.mxu0 0.0
    %496 = vmatpush1.msra.mxu0 0.0
    %497 = vmatprep.subr.mxu0 0.0
    %498 = vmatpush1.msra.mxu0 0.0
    %499 = vmatprep.subr.mxu0 0.0
    %500 = vmatpush1.msra.mxu0 0.0
    %501 = vmatprep.subr.mxu0 0.0
    %502 = vmatpush1.msra.mxu0 0.0
    %503 = vmatprep.subr.mxu0 0.0
    %504 = vmatpush1.msra.mxu0 0.0
    %505 = vmatprep.mubr.f32.mxu0 0.0
    %506 = vmatmul.mubr.f32.gmra.mrb[0].mxu0 %v368
    %v507 = vpop.f32.mrb[0].mxu0
    %v508 = vadd.f32 %v361, %v507
    %v509 = vpop.f32.mrb[0].mxu0
    %v510 = vadd.f32 %v365, %v509
    %511 = vdwg.mxu0
    %v512 = vmax.f32 %v437, 0.0
    %v513 = vmax.f32 %v439, 0.0
    %v514 = vmax.f32 %v508, 0.0
    %v515 = vmax.f32 %v510, 0.0
    %v516 = vlaneseq
    %v517 = vshrl.u32 %v516, 7
    %v518 = vsub.s32 1, %v517
    %v519 = vrot.slane %v326, %v518
    %v520 = vlaneseq
    %v521 = vshrl.u32 %v520, 7
    %v522 = vsub.s32 5, %v521
    %v523 = vrot.slane %v326, %v522
    %v524 = vlaneseq
    %v525 = vshrl.u32 %v524, 7
    %v526 = vsub.s32 1, %v525
    %v527 = vrot.slane %v327, %v526
    %v531 = vlaneseq
    %v532 = vshrl.u32 %v531, 7
    %v533 = vsub.s32 1, %v532
    %v534 = vrot.slane %v519, %v533
    %v535 = vlaneseq
    %v536 = vshrl.u32 %v535, 7
    %v537 = vsub.s32 1, %v536
    %v538 = vrot.slane %v523, %v537
    %v539 = vlaneseq
    %v540 = vshrl.u32 %v539, 7
    %v541 = vsub.s32 1, %v540
    %v542 = vrot.slane %v527, %v541
    %vm543 = vcmask 130048
    %v545 = vsel %vm543, %v515, 0
    %547 = vmatprep.subr.mxu0 %v177
    %548 = vmatpush1.msra.mxu0 %v176
    %549 = vmatprep.subr.mxu0 %v180
    %550 = vmatpush1.msra.mxu0 %v179
    %551 = vmatprep.subr.mxu0 %v183
    %552 = vmatpush1.msra.mxu0 %v182
    %553 = vmatprep.subr.mxu0 %v186
    %554 = vmatpush1.msra.mxu0 %v185
    %555 = vmatprep.subr.mxu0 %v189
    %556 = vmatpush1.msra.mxu0 %v188
    %557 = vmatprep.subr.mxu0 %v192
    %558 = vmatpush1.msra.mxu0 %v191
    %559 = vmatprep.subr.mxu0 %v195
    %560 = vmatpush1.msra.mxu0 %v194
    %561 = vmatprep.subr.mxu0 %v198
    %562 = vmatpush1.msra.mxu0 %v197
    %563 = vmatprep.subr.mxu0 %v201
    %564 = vmatpush1.msra.mxu0 %v200
    %565 = vmatprep.subr.mxu0 %v204
    %566 = vmatpush1.msra.mxu0 %v203
    %567 = vmatprep.subr.mxu0 %v207
    %568 = vmatpush1.msra.mxu0 %v206
    %569 = vmatprep.subr.mxu0 %v210
    %570 = vmatpush1.msra.mxu0 %v209
    %571 = vmatprep.subr.mxu0 %v213
    %572 = vmatpush1.msra.mxu0 %v212
    %573 = vmatprep.subr.mxu0 %v216
    %574 = vmatpush1.msra.mxu0 %v215
    %575 = vmatprep.subr.mxu0 %v219
    %576 = vmatpush1.msra.mxu0 %v218
    %577 = vmatprep.subr.mxu0 %v222
    %578 = vmatpush1.msra.mxu0 %v221
    %579 = vmatprep.subr.mxu0 %v225
    %580 = vmatpush1.msra.mxu0 %v224
    %581 = vmatprep.subr.mxu0 %v228
    %582 = vmatpush1.msra.mxu0 %v227
    %583 = vmatprep.subr.mxu0 %v231
    %584 = vmatpush1.msra.mxu0 %v230
    %585 = vmatprep.subr.mxu0 %v234
    %586 = vmatpush1.msra.mxu0 %v233
    %587 = vmatprep.subr.mxu0 %v237
    %588 = vmatpush1.msra.mxu0 %v236
    %589 = vmatprep.subr.mxu0 %v240
    %590 = vmatpush1.msra.mxu0 %v239
    %591 = vmatprep.subr.mxu0 %v243
    %592 = vmatpush1.msra.mxu0 %v242
    %593 = vmatprep.subr.mxu0 %v246
    %594 = vmatpush1.msra.mxu0 %v245
    %595 = vmatprep.subr.mxu0 %v249
    %596 = vmatpush1.msra.mxu0 %v248
    %597 = vmatprep.subr.mxu0 %v252
    %598 = vmatpush1.msra.mxu0 %v251
    %599 = vmatprep.subr.mxu0 %v255
    %600 = vmatpush1.msra.mxu0 %v254
    %601 = vmatprep.subr.mxu0 %v258
    %602 = vmatpush1.msra.mxu0 %v257
    %603 = vmatprep.subr.mxu0 %v261
    %604 = vmatpush1.msra.mxu0 %v260
    %605 = vmatprep.subr.mxu0 %v264
    %606 = vmatpush1.msra.mxu0 %v263
    %607 = vmatprep.subr.mxu0 %v267
    %608 = vmatpush1.msra.mxu0 %v266
    %609 = vmatprep.subr.mxu0 %v270
    %610 = vmatpush1.msra.mxu0 %v269
    %611 = vmatprep.mubr.f32.mxu0 %v513
    %612 = vmatmul.mubr.f32.gmra.mrb[0].mxu0 %v512
    %v613 = vpop.f32.mrb[0].mxu0
    %v614 = vadd.f32 %v534, %v613
    %v615 = vpop.f32.mrb[0].mxu0
    %v616 = vadd.f32 %v538, %v615
    %617 = vdwg.mxu0
    %618 = vmatprep.subr.mxu0 %v273
    %619 = vmatpush1.msra.mxu0 %v272
    %620 = vmatprep.subr.mxu0 %v276
    %621 = vmatpush1.msra.mxu0 %v275
    %622 = vmatprep.subr.mxu0 %v279
    %623 = vmatpush1.msra.mxu0 %v278
    %624 = vmatprep.subr.mxu0 %v282
    %625 = vmatpush1.msra.mxu0 %v281
    %626 = vmatprep.subr.mxu0 %v285
    %627 = vmatpush1.msra.mxu0 %v284
    %628 = vmatprep.subr.mxu0 %v288
    %629 = vmatpush1.msra.mxu0 %v287
    %630 = vmatprep.subr.mxu0 %v291
    %631 = vmatpush1.msra.mxu0 %v290
    %632 = vmatprep.subr.mxu0 %v294
    %633 = vmatpush1.msra.mxu0 %v293
    %634 = vmatprep.subr.mxu0 %v297
    %635 = vmatpush1.msra.mxu0 %v296
    %636 = vmatprep.subr.mxu0 %v300
    %637 = vmatpush1.msra.mxu0 %v299
    %638 = vmatprep.subr.mxu0 %v303
    %639 = vmatpush1.msra.mxu0 %v302
    %640 = vmatprep.subr.mxu0 %v306
    %641 = vmatpush1.msra.mxu0 %v305
    %642 = vmatprep.subr.mxu0 %v309
    %643 = vmatpush1.msra.mxu0 %v308
    %644 = vmatprep.subr.mxu0 %v312
    %645 = vmatpush1.msra.mxu0 %v311
    %646 = vmatprep.subr.mxu0 %v315
    %647 = vmatpush1.msra.mxu0 %v314
    %648 = vmatprep.subr.mxu0 %v318
    %649 = vmatpush1.msra.mxu0 %v317
    %650 = vmatprep.subr.mxu0 %v321
    %651 = vmatpush1.msra.mxu0 %v320
    %652 = vmatprep.subr.mxu0 %v324
    %653 = vmatpush1.msra.mxu0 %v323
    %654 = vmatprep.subr.mxu0 0.0
    %655 = vmatpush1.msra.mxu0 0.0
    %656 = vmatprep.subr.mxu0 0.0
    %657 = vmatpush1.msra.mxu0 0.0
    %658 = vmatprep.subr.mxu0 0.0
    %659 = vmatpush1.msra.mxu0 0.0
    %660 = vmatprep.subr.mxu0 0.0
    %661 = vmatpush1.msra.mxu0 0.0
    %662 = vmatprep.subr.mxu0 0.0
    %663 = vmatpush1.msra.mxu0 0.0
    %664 = vmatprep.subr.mxu0 0.0
    %665 = vmatpush1.msra.mxu0 0.0
    %666 = vmatprep.subr.mxu0 0.0
    %667 = vmatpush1.msra.mxu0 0.0
    %668 = vmatprep.subr.mxu0 0.0
    %669 = vmatpush1.msra.mxu0 0.0
    %670 = vmatprep.subr.mxu0 0.0
    %671 = vmatpush1.msra.mxu0 0.0
    %672 = vmatprep.subr.mxu0 0.0
    %673 = vmatpush1.msra.mxu0 0.0
    %674 = vmatprep.subr.mxu0 0.0
    %675 = vmatpush1.msra.mxu0 0.0
    %676 = vmatprep.subr.mxu0 0.0
    %677 = vmatpush1.msra.mxu0 0.0
    %678 = vmatprep.subr.mxu0 0.0
    %679 = vmatpush1.msra.mxu0 0.0
    %680 = vmatprep.subr.mxu0 0.0
    %681 = vmatpush1.msra.mxu0 0.0
    %682 = vmatprep.mubr.f32.mxu0 %v545
    %683 = vmatmul.mubr.f32.gmra.mrb[0].mxu0 %v514
    %v684 = vpop.f32.mrb[0].mxu0
    %v685 = vadd.f32 %v614, %v684
    %v686 = vpop.f32.mrb[0].mxu0
    %v687 = vadd.f32 %v616, %v686
    %688 = vdwg.mxu0
    %689 = vmatprep.subr.mxu0 0.0
    %690 = vmatpush1.msra.mxu0 %v178
    %691 = vmatprep.subr.mxu0 0.0
    %692 = vmatpush1.msra.mxu0 %v181
    %693 = vmatprep.subr.mxu0 0.0
    %694 = vmatpush1.msra.mxu0 %v184
    %695 = vmatprep.subr.mxu0 0.0
    %696 = vmatpush1.msra.mxu0 %v187
    %697 = vmatprep.subr.mxu0 0.0
    %698 = vmatpush1.msra.mxu0 %v190
    %699 = vmatprep.subr.mxu0 0.0
    %700 = vmatpush1.msra.mxu0 %v193
    %701 = vmatprep.subr.mxu0 0.0
    %702 = vmatpush1.msra.mxu0 %v196
    %703 = vmatprep.subr.mxu0 0.0
    %704 = vmatpush1.msra.mxu0 %v199
    %705 = vmatprep.subr.mxu0 0.0
    %706 = vmatpush1.msra.mxu0 %v202
    %707 = vmatprep.subr.mxu0 0.0
    %708 = vmatpush1.msra.mxu0 %v205
    %709 = vmatprep.subr.mxu0 0.0
    %710 = vmatpush1.msra.mxu0 %v208
    %711 = vmatprep.subr.mxu0 0.0
    %712 = vmatpush1.msra.mxu0 %v211
    %713 = vmatprep.subr.mxu0 0.0
    %714 = vmatpush1.msra.mxu0 %v214
    %715 = vmatprep.subr.mxu0 0.0
    %716 = vmatpush1.msra.mxu0 %v217
    %717 = vmatprep.subr.mxu0 0.0
    %718 = vmatpush1.msra.mxu0 %v220
    %719 = vmatprep.subr.mxu0 0.0
    %720 = vmatpush1.msra.mxu0 %v223
    %721 = vmatprep.subr.mxu0 0.0
    %722 = vmatpush1.msra.mxu0 %v226
    %723 = vmatprep.subr.mxu0 0.0
    %724 = vmatpush1.msra.mxu0 %v229
    %725 = vmatprep.subr.mxu0 0.0
    %726 = vmatpush1.msra.mxu0 %v232
    %727 = vmatprep.subr.mxu0 0.0
    %728 = vmatpush1.msra.mxu0 %v235
    %729 = vmatprep.subr.mxu0 0.0
    %730 = vmatpush1.msra.mxu0 %v238
    %731 = vmatprep.subr.mxu0 0.0
    %732 = vmatpush1.msra.mxu0 %v241
    %733 = vmatprep.subr.mxu0 0.0
    %734 = vmatpush1.msra.mxu0 %v244
    %735 = vmatprep.subr.mxu0 0.0
    %736 = vmatpush1.msra.mxu0 %v247
    %737 = vmatprep.subr.mxu0 0.0
    %738 = vmatpush1.msra.mxu0 %v250
    %739 = vmatprep.subr.mxu0 0.0
    %740 = vmatpush1.msra.mxu0 %v253
    %741 = vmatprep.subr.mxu0 0.0
    %742 = vmatpush1.msra.mxu0 %v256
    %743 = vmatprep.subr.mxu0 0.0
    %744 = vmatpush1.msra.mxu0 %v259
    %745 = vmatprep.subr.mxu0 0.0
    %746 = vmatpush1.msra.mxu0 %v262
    %747 = vmatprep.subr.mxu0 0.0
    %748 = vmatpush1.msra.mxu0 %v265
    %749 = vmatprep.subr.mxu0 0.0
    %750 = vmatpush1.msra.mxu0 %v268
    %751 = vmatprep.subr.mxu0 0.0
    %752 = vmatpush1.msra.mxu0 %v271
    %753 = vmatprep.mubr.f32.mxu0 %v513
    %754 = vmatmul.mubr.f32.gmra.mrb[0].mxu0 %v512
    %v755 = vpop.f32.mrb[0].mxu0
    %v756 = vadd.f32 %v542, %v755
    %v757 = vpop.f32.mrb[0].mxu0
    %758 = vdwg.mxu0
    %759 = vmatprep.subr.mxu0 0.0
    %760 = vmatpush1.msra.mxu0 %v274
    %761 = vmatprep.subr.mxu0 0.0
    %762 = vmatpush1.msra.mxu0 %v277
    %763 = vmatprep.subr.mxu0 0.0
    %764 = vmatpush1.msra.mxu0 %v280
    %765 = vmatprep.subr.mxu0 0.0
    %766 = vmatpush1.msra.mxu0 %v283
    %767 = vmatprep.subr.mxu0 0.0
    %768 = vmatpush1.msra.mxu0 %v286
    %769 = vmatprep.subr.mxu0 0.0
    %770 = vmatpush1.msra.mxu0 %v289
    %771 = vmatprep.subr.mxu0 0.0
    %772 = vmatpush1.msra.mxu0 %v292
    %773 = vmatprep.subr.mxu0 0.0
    %774 = vmatpush1.msra.mxu0 %v295
    %775 = vmatprep.subr.mxu0 0.0
    %776 = vmatpush1.msra.mxu0 %v298
    %777 = vmatprep.subr.mxu0 0.0
    %778 = vmatpush1.msra.mxu0 %v301
    %779 = vmatprep.subr.mxu0 0.0
    %780 = vmatpush1.msra.mxu0 %v304
    %781 = vmatprep.subr.mxu0 0.0
    %782 = vmatpush1.msra.mxu0 %v307
    %783 = vmatprep.subr.mxu0 0.0
    %784 = vmatpush1.msra.mxu0 %v310
    %785 = vmatprep.subr.mxu0 0.0
    %786 = vmatpush1.msra.mxu0 %v313
    %787 = vmatprep.subr.mxu0 0.0
    %788 = vmatpush1.msra.mxu0 %v316
    %789 = vmatprep.subr.mxu0 0.0
    %790 = vmatpush1.msra.mxu0 %v319
    %791 = vmatprep.subr.mxu0 0.0
    %792 = vmatpush1.msra.mxu0 %v322
    %793 = vmatprep.subr.mxu0 0.0
    %794 = vmatpush1.msra.mxu0 %v325
    %795 = vmatprep.subr.mxu0 0.0
    %796 = vmatpush1.msra.mxu0 0.0
    %797 = vmatprep.subr.mxu0 0.0
    %798 = vmatpush1.msra.mxu0 0.0
    %799 = vmatprep.subr.mxu0 0.0
    %800 = vmatpush1.msra.mxu0 0.0
    %801 = vmatprep.subr.mxu0 0.0
    %802 = vmatpush1.msra.mxu0 0.0
    %803 = vmatprep.subr.mxu0 0.0
    %804 = vmatpush1.msra.mxu0 0.0
    %805 = vmatprep.subr.mxu0 0.0
    %806 = vmatpush1.msra.mxu0 0.0
    %807 = vmatprep.subr.mxu0 0.0
    %808 = vmatpush1.msra.mxu0 0.0
    %809 = vmatprep.subr.mxu0 0.0
    %810 = vmatpush1.msra.mxu0 0.0
    %811 = vmatprep.subr.mxu0 0.0
    %812 = vmatpush1.msra.mxu0 0.0
    %813 = vmatprep.subr.mxu0 0.0
    %814 = vmatpush1.msra.mxu0 0.0
    %815 = vmatprep.subr.mxu0 0.0
    %816 = vmatpush1.msra.mxu0 0.0
    %817 = vmatprep.subr.mxu0 0.0
    %818 = vmatpush1.msra.mxu0 0.0
    %819 = vmatprep.subr.mxu0 0.0
    %820 = vmatpush1.msra.mxu0 0.0
    %821 = vmatprep.subr.mxu0 0.0
    %822 = vmatpush1.msra.mxu0 0.0
    %823 = vmatprep.mubr.f32.mxu0 %v545
    %824 = vmatmul.mubr.f32.gmra.mrb[0].mxu0 %v514
    %v825 = vpop.f32.mrb[0].mxu0
    %v826 = vadd.f32 %v756, %v825
    %v827 = vpop.f32.mrb[0].mxu0
    %828 = vdwg.mxu0
    %v829 = vmax.f32 %v685, 0.0
    %v830 = vmax.f32 %v687, 0.0
    %v831 = vmax.f32 %v826, 0.0
    %v832 = vlaneseq
    %v833 = vshrl.u32 %v832, 7
    %v834 = vsub.s32 2, %v833
    %v835 = vrot.slane %v326, %v834
    %v836 = vlaneseq
    %v837 = vshrl.u32 %v836, 7
    %v838 = vsub.s32 6, %v837
    %v839 = vrot.slane %v326, %v838
    %v840 = vlaneseq
    %v841 = vshrl.u32 %v840, 7
    %v842 = vsub.s32 2, %v841
    %v843 = vrot.slane %v327, %v842
    %v847 = vlaneseq
    %v848 = vshrl.u32 %v847, 7
    %v849 = vsub.s32 2, %v848
    %v850 = vrot.slane %v835, %v849
    %v851 = vlaneseq
    %v852 = vshrl.u32 %v851, 7
    %v853 = vsub.s32 2, %v852
    %v854 = vrot.slane %v839, %v853
    %v855 = vlaneseq
    %v856 = vshrl.u32 %v855, 7
    %v857 = vsub.s32 2, %v856
    %v858 = vrot.slane %v843, %v857
    %v859 = vmul.f32 %v829, %v850
    %v860 = vmul.f32 %v830, %v854
    %v861 = vmul.f32 %v831, %v858
    %vm862 = vcmask 1041408
    %v863 = vsel %vm862, %v859, 0.0
    %v864 = vsel %vm862, %v860, 0.0
    %v865 = vadd.f32 %v863, %v864
    %vm866 = vcmask 353280
    %v867 = vsel %vm866, %v861, 0.0
    %v868 = vadd.f32 %v865, %v867
    %869 = vadd.xlane.f32.xlu0 %v868
    %v870 = vpop.xlane.xlu0 %869
    %v871 = vlaneseq
    %v872 = vshrl.u32 %v871, 7
    %v873 = vsub.s32 3, %v872
    %v874 = vrot.slane %v326, %v873
    %v875 = vadd.f32 %v870, %v874
    %vm876 = vcmask 1024
    %877 = vst.msk [vmem:[#allocation10] sm:$0x3] %vm876, %v875
    %s878 = scalar_lea.vmem [#allocation5], 32
    %v879 = vld [vmem:[%s878] sm:$0xff]
    %v880 = vld [vmem:[%s878 + $0x8] sm:$0xff]
    %v881 = vld [vmem:[%s878 + $0x10] sm:$0xff]
    %v882 = vld [vmem:[%s878 + $0x18] sm:$0xff]
    %s883 = scalar_lea.vmem [#allocation7], 600
    %v884 = vld [vmem:[%s883] sm:$0xff]
    %v885 = vld [vmem:[%s883 + $0x8] sm:$0xf]
    %v886 = vld [vmem:[%s883 + $0xc] sm:$0xff]
    %v887 = vld [vmem:[%s883 + $0x14] sm:$0xf]
    %v888 = vld [vmem:[%s883 + $0x18] sm:$0xff]
    %v889 = vld [vmem:[%s883 + $0x20] sm:$0xf]
    %v890 = vld [vmem:[%s883 + $0x24] sm:$0xff]
    %v891 = vld [vmem:[%s883 + $0x2c] sm:$0xf]
    %v892 = vld [vmem:[%s883 + $0x30] sm:$0xff]
    %v893 = vld [vmem:[%s883 + $0x38] sm:$0xf]
    %v894 = vld [vmem:[%s883 + $0x3c] sm:$0xff]
    %v895 = vld [vmem:[%s883 + $0x44] sm:$0xf]
    %v896 = vld [vmem:[%s883 + $0x48] sm:$0xff]
    %v897 = vld [vmem:[%s883 + $0x50] sm:$0xf]
    %v898 = vld [vmem:[%s883 + $0x54] sm:$0xff]
    %v899 = vld [vmem:[%s883 + $0x5c] sm:$0xf]
    %v900 = vld [vmem:[%s883 + $0x60] sm:$0xff]
    %v901 = vld [vmem:[%s883 + $0x68] sm:$0xf]
    %v902 = vld [vmem:[%s883 + $0x6c] sm:$0xff]
    %v903 = vld [vmem:[%s883 + $0x74] sm:$0xf]
    %v904 = vld [vmem:[%s883 + $0x78] sm:$0xff]
    %v905 = vld [vmem:[%s883 + $0x80] sm:$0xf]
    %v906 = vld [vmem:[%s883 + $0x84] sm:$0xff]
    %v907 = vld [vmem:[%s883 + $0x8c] sm:$0xf]
    %v908 = vld [vmem:[%s883 + $0x90] sm:$0xff]
    %v909 = vld [vmem:[%s883 + $0x98] sm:$0xf]
    %v910 = vld [vmem:[%s883 + $0x9c] sm:$0xff]
    %v911 = vld [vmem:[%s883 + $0xa4] sm:$0xf]
    %v912 = vld [vmem:[%s883 + $0xa8] sm:$0xff]
    %v913 = vld [vmem:[%s883 + $0xb0] sm:$0xf]
    %v914 = vld [vmem:[%s883 + $0xb4] sm:$0xff]
    %v915 = vld [vmem:[%s883 + $0xbc] sm:$0xf]
    %v916 = vld [vmem:[%s883 + $0xc0] sm:$0xff]
    %v917 = vld [vmem:[%s883 + $0xc8] sm:$0xf]
    %v918 = vld [vmem:[%s883 + $0xcc] sm:$0xff]
    %v919 = vld [vmem:[%s883 + $0xd4] sm:$0xf]
    %v920 = vld [vmem:[%s883 + $0xd8] sm:$0xff]
    %v921 = vld [vmem:[%s883 + $0xe0] sm:$0xf]
    %v922 = vld [vmem:[%s883 + $0xe4] sm:$0xff]
    %v923 = vld [vmem:[%s883 + $0xec] sm:$0xf]
    %v924 = vld [vmem:[%s883 + $0xf0] sm:$0xff]
    %v925 = vld [vmem:[%s883 + $0xf8] sm:$0xf]
    %v926 = vld [vmem:[%s883 + $0xfc] sm:$0xff]
    %v927 = vld [vmem:[%s883 + $0x104] sm:$0xf]
    %v928 = vld [vmem:[%s883 + $0x108] sm:$0xff]
    %v929 = vld [vmem:[%s883 + $0x110] sm:$0xf]
    %v930 = vld [vmem:[%s883 + $0x114] sm:$0xff]
    %v931 = vld [vmem:[%s883 + $0x11c] sm:$0xf]
    %v932 = vld [vmem:[%s883 + $0x120] sm:$0xff]
    %v933 = vld [vmem:[%s883 + $0x128] sm:$0xf]
    %v934 = vld [vmem:[%s883 + $0x12c] sm:$0xff]
    %v935 = vld [vmem:[%s883 + $0x134] sm:$0xf]
    %v936 = vld [vmem:[%s883 + $0x138] sm:$0xff]
    %v937 = vld [vmem:[%s883 + $0x140] sm:$0xf]
    %v938 = vld [vmem:[%s883 + $0x144] sm:$0xff]
    %v939 = vld [vmem:[%s883 + $0x14c] sm:$0xf]
    %v940 = vld [vmem:[%s883 + $0x150] sm:$0xff]
    %v941 = vld [vmem:[%s883 + $0x158] sm:$0xf]
    %v942 = vld [vmem:[%s883 + $0x15c] sm:$0xff]
    %v943 = vld [vmem:[%s883 + $0x164] sm:$0xf]
    %v944 = vld [vmem:[%s883 + $0x168] sm:$0xff]
    %v945 = vld [vmem:[%s883 + $0x170] sm:$0xf]
    %v946 = vld [vmem:[%s883 + $0x174] sm:$0xff]
    %v947 = vld [vmem:[%s883 + $0x17c] sm:$0xf]
    %v948 = vld [vmem:[%s883 + $0x180] sm:$0xff]
    %v949 = vld [vmem:[%s883 + $0x188] sm:$0xf]
    %v950 = vld [vmem:[%s883 + $0x18c] sm:$0xff]
    %v951 = vld [vmem:[%s883 + $0x194] sm:$0xf]
    %v952 = vld [vmem:[%s883 + $0x198] sm:$0xff]
    %v953 = vld [vmem:[%s883 + $0x1a0] sm:$0xf]
    %v954 = vld [vmem:[%s883 + $0x1a4] sm:$0xff]
    %v955 = vld [vmem:[%s883 + $0x1ac] sm:$0xf]
    %v956 = vld [vmem:[%s883 + $0x1b0] sm:$0xff]
    %v957 = vld [vmem:[%s883 + $0x1b8] sm:$0xf]
    %v958 = vld [vmem:[%s883 + $0x1bc] sm:$0xff]
    %v959 = vld [vmem:[%s883 + $0x1c4] sm:$0xf]
    %v960 = vld [vmem:[%s883 + $0x1c8] sm:$0xff]
    %v961 = vld [vmem:[%s883 + $0x1d0] sm:$0xf]
    %v962 = vld [vmem:[%s883 + $0x1d4] sm:$0xff]
    %v963 = vld [vmem:[%s883 + $0x1dc] sm:$0xf]
    %v964 = vld [vmem:[%s883 + $0x1e0] sm:$0xff]
    %v965 = vld [vmem:[%s883 + $0x1e8] sm:$0xf]
    %v966 = vld [vmem:[%s883 + $0x1ec] sm:$0xff]
    %v967 = vld [vmem:[%s883 + $0x1f4] sm:$0xf]
    %v968 = vld [vmem:[%s883 + $0x1f8] sm:$0xff]
    %v969 = vld [vmem:[%s883 + $0x200] sm:$0xf]
    %v970 = vld [vmem:[%s883 + $0x204] sm:$0xff]
    %v971 = vld [vmem:[%s883 + $0x20c] sm:$0xf]
    %v972 = vld [vmem:[%s883 + $0x210] sm:$0xff]
    %v973 = vld [vmem:[%s883 + $0x218] sm:$0xf]
    %v974 = vld [vmem:[%s883 + $0x21c] sm:$0xff]
    %v975 = vld [vmem:[%s883 + $0x224] sm:$0xf]
    %v976 = vld [vmem:[%s883 + $0x228] sm:$0xff]
    %v977 = vld [vmem:[%s883 + $0x230] sm:$0xf]
    %v978 = vld [vmem:[%s883 + $0x234] sm:$0xff]
    %v979 = vld [vmem:[%s883 + $0x23c] sm:$0xf]
    %v980 = vld [vmem:[%s883 + $0x240] sm:$0xff]
    %v981 = vld [vmem:[%s883 + $0x248] sm:$0xf]
    %v982 = vld [vmem:[%s883 + $0x24c] sm:$0xff]
    %v983 = vld [vmem:[%s883 + $0x254] sm:$0xf]
    %v984 = vunpack.c.l.bf16 %v884
    %v985 = vunpack.c.h.bf16 %v884
    %v986 = vunpack.c.l.bf16 %v885
    %v987 = vunpack.c.l.bf16 %v886
    %v988 = vunpack.c.h.bf16 %v886
    %v989 = vunpack.c.l.bf16 %v887
    %v990 = vunpack.c.l.bf16 %v888
    %v991 = vunpack.c.h.bf16 %v888
    %v992 = vunpack.c.l.bf16 %v889
    %v993 = vunpack.c.l.bf16 %v890
    %v994 = vunpack.c.h.bf16 %v890
    %v995 = vunpack.c.l.bf16 %v891
    %v996 = vunpack.c.l.bf16 %v892
    %v997 = vunpack.c.h.bf16 %v892
    %v998 = vunpack.c.l.bf16 %v893
    %v999 = vunpack.c.l.bf16 %v894
    %v1000 = vunpack.c.h.bf16 %v894
    %v1001 = vunpack.c.l.bf16 %v895
    %v1002 = vunpack.c.l.bf16 %v896
    %v1003 = vunpack.c.h.bf16 %v896
    %v1004 = vunpack.c.l.bf16 %v897
    %v1005 = vunpack.c.l.bf16 %v898
    %v1006 = vunpack.c.h.bf16 %v898
    %v1007 = vunpack.c.l.bf16 %v899
    %v1008 = vunpack.c.l.bf16 %v900
    %v1009 = vunpack.c.h.bf16 %v900
    %v1010 = vunpack.c.l.bf16 %v901
    %v1011 = vunpack.c.l.bf16 %v902
    %v1012 = vunpack.c.h.bf16 %v902
    %v1013 = vunpack.c.l.bf16 %v903
    %v1014 = vunpack.c.l.bf16 %v904
    %v1015 = vunpack.c.h.bf16 %v904
    %v1016 = vunpack.c.l.bf16 %v905
    %v1017 = vunpack.c.l.bf16 %v906
    %v1018 = vunpack.c.h.bf16 %v906
    %v1019 = vunpack.c.l.bf16 %v907
    %v1020 = vunpack.c.l.bf16 %v908
    %v1021 = vunpack.c.h.bf16 %v908
    %v1022 = vunpack.c.l.bf16 %v909
    %v1023 = vunpack.c.l.bf16 %v910
    %v1024 = vunpack.c.h.bf16 %v910
    %v1025 = vunpack.c.l.bf16 %v911
    %v1026 = vunpack.c.l.bf16 %v912
    %v1027 = vunpack.c.h.bf16 %v912
    %v1028 = vunpack.c.l.bf16 %v913
    %v1029 = vunpack.c.l.bf16 %v914
    %v1030 = vunpack.c.h.bf16 %v914
    %v1031 = vunpack.c.l.bf16 %v915
    %v1032 = vunpack.c.l.bf16 %v916
    %v1033 = vunpack.c.h.bf16 %v916
    %v1034 = vunpack.c.l.bf16 %v917
    %v1035 = vunpack.c.l.bf16 %v918
    %v1036 = vunpack.c.h.bf16 %v918
    %v1037 = vunpack.c.l.bf16 %v919
    %v1038 = vunpack.c.l.bf16 %v920
    %v1039 = vunpack.c.h.bf16 %v920
    %v1040 = vunpack.c.l.bf16 %v921
    %v1041 = vunpack.c.l.bf16 %v922
    %v1042 = vunpack.c.h.bf16 %v922
    %v1043 = vunpack.c.l.bf16 %v923
    %v1044 = vunpack.c.l.bf16 %v924
    %v1045 = vunpack.c.h.bf16 %v924
    %v1046 = vunpack.c.l.bf16 %v925
    %v1047 = vunpack.c.l.bf16 %v926
    %v1048 = vunpack.c.h.bf16 %v926
    %v1049 = vunpack.c.l.bf16 %v927
    %v1050 = vunpack.c.l.bf16 %v928
    %v1051 = vunpack.c.h.bf16 %v928
    %v1052 = vunpack.c.l.bf16 %v929
    %v1053 = vunpack.c.l.bf16 %v930
    %v1054 = vunpack.c.h.bf16 %v930
    %v1055 = vunpack.c.l.bf16 %v931
    %v1056 = vunpack.c.l.bf16 %v932
    %v1057 = vunpack.c.h.bf16 %v932
    %v1058 = vunpack.c.l.bf16 %v933
    %v1059 = vunpack.c.l.bf16 %v934
    %v1060 = vunpack.c.h.bf16 %v934
    %v1061 = vunpack.c.l.bf16 %v935
    %v1062 = vunpack.c.l.bf16 %v936
    %v1063 = vunpack.c.h.bf16 %v936
    %v1064 = vunpack.c.l.bf16 %v937
    %v1065 = vunpack.c.l.bf16 %v938
    %v1066 = vunpack.c.h.bf16 %v938
    %v1067 = vunpack.c.l.bf16 %v939
    %v1068 = vunpack.c.l.bf16 %v940
    %v1069 = vunpack.c.h.bf16 %v940
    %v1070 = vunpack.c.l.bf16 %v941
    %v1071 = vunpack.c.l.bf16 %v942
    %v1072 = vunpack.c.h.bf16 %v942
    %v1073 = vunpack.c.l.bf16 %v943
    %v1074 = vunpack.c.l.bf16 %v944
    %v1075 = vunpack.c.h.bf16 %v944
    %v1076 = vunpack.c.l.bf16 %v945
    %v1077 = vunpack.c.l.bf16 %v946
    %v1078 = vunpack.c.h.bf16 %v946
    %v1079 = vunpack.c.l.bf16 %v947
    %v1080 = vunpack.c.l.bf16 %v948
    %v1081 = vunpack.c.h.bf16 %v948
    %v1082 = vunpack.c.l.bf16 %v949
    %v1083 = vunpack.c.l.bf16 %v950
    %v1084 = vunpack.c.h.bf16 %v950
    %v1085 = vunpack.c.l.bf16 %v951
    %v1086 = vunpack.c.l.bf16 %v952
    %v1087 = vunpack.c.h.bf16 %v952
    %v1088 = vunpack.c.l.bf16 %v953
    %v1089 = vunpack.c.l.bf16 %v954
    %v1090 = vunpack.c.h.bf16 %v954
    %v1091 = vunpack.c.l.bf16 %v955
    %v1092 = vunpack.c.l.bf16 %v956
    %v1093 = vunpack.c.h.bf16 %v956
    %v1094 = vunpack.c.l.bf16 %v957
    %v1095 = vunpack.c.l.bf16 %v958
    %v1096 = vunpack.c.h.bf16 %v958
    %v1097 = vunpack.c.l.bf16 %v959
    %v1098 = vunpack.c.l.bf16 %v960
    %v1099 = vunpack.c.h.bf16 %v960
    %v1100 = vunpack.c.l.bf16 %v961
    %v1101 = vunpack.c.l.bf16 %v962
    %v1102 = vunpack.c.h.bf16 %v962
    %v1103 = vunpack.c.l.bf16 %v963
    %v1104 = vunpack.c.l.bf16 %v964
    %v1105 = vunpack.c.h.bf16 %v964
    %v1106 = vunpack.c.l.bf16 %v965
    %v1107 = vunpack.c.l.bf16 %v966
    %v1108 = vunpack.c.h.bf16 %v966
    %v1109 = vunpack.c.l.bf16 %v967
    %v1110 = vunpack.c.l.bf16 %v968
    %v1111 = vunpack.c.h.bf16 %v968
    %v1112 = vunpack.c.l.bf16 %v969
    %v1113 = vunpack.c.l.bf16 %v970
    %v1114 = vunpack.c.h.bf16 %v970
    %v1115 = vunpack.c.l.bf16 %v971
    %v1116 = vunpack.c.l.bf16 %v972
    %v1117 = vunpack.c.h.bf16 %v972
    %v1118 = vunpack.c.l.bf16 %v973
    %v1119 = vunpack.c.l.bf16 %v974
    %v1120 = vunpack.c.h.bf16 %v974
    %v1121 = vunpack.c.l.bf16 %v975
    %v1122 = vunpack.c.l.bf16 %v976
    %v1123 = vunpack.c.h.bf16 %v976
    %v1124 = vunpack.c.l.bf16 %v977
    %v1125 = vunpack.c.l.bf16 %v978
    %v1126 = vunpack.c.h.bf16 %v978
    %v1127 = vunpack.c.l.bf16 %v979
    %v1128 = vunpack.c.l.bf16 %v980
    %v1129 = vunpack.c.h.bf16 %v980
    %v1130 = vunpack.c.l.bf16 %v981
    %v1131 = vunpack.c.l.bf16 %v982
    %v1132 = vunpack.c.h.bf16 %v982
    %v1133 = vunpack.c.l.bf16 %v983
    %s1134 = scalar_lea.vmem [#allocation8], 16
    %v1135 = vld [vmem:[%s1134] sm:$0xff]
    %v1136 = vld [vmem:[%s1134 + $0x8] sm:$0xff]
    %v1139 = vlaneseq
    %v1140 = vshrl.u32 %v1139, 7
    %v1141 = vsub.s32 0, %v1140
    %v1142 = vrot.slane %v1135, %v1141
    %v1143 = vlaneseq
    %v1144 = vshrl.u32 %v1143, 7
    %v1145 = vsub.s32 4, %v1144
    %v1146 = vrot.slane %v1135, %v1145
    %v1147 = vlaneseq
    %v1148 = vshrl.u32 %v1147, 7
    %v1149 = vsub.s32 0, %v1148
    %v1150 = vrot.slane %v1136, %v1149
    %v1151 = vlaneseq
    %v1152 = vshrl.u32 %v1151, 7
    %v1153 = vsub.s32 4, %v1152
    %v1154 = vrot.slane %v1136, %v1153
    %v1159 = vlaneseq
    %v1160 = vshrl.u32 %v1159, 7
    %v1161 = vsub.s32 0, %v1160
    %v1162 = vrot.slane %v1142, %v1161
    %v1163 = vlaneseq
    %v1164 = vshrl.u32 %v1163, 7
    %v1165 = vsub.s32 0, %v1164
    %v1166 = vrot.slane %v1146, %v1165
    %v1167 = vlaneseq
    %v1168 = vshrl.u32 %v1167, 7
    %v1169 = vsub.s32 0, %v1168
    %v1170 = vrot.slane %v1150, %v1169
    %v1171 = vlaneseq
    %v1172 = vshrl.u32 %v1171, 7
    %v1173 = vsub.s32 0, %v1172
    %v1174 = vrot.slane %v1154, %v1173
    %1175 = vmatprep.subr.mxu0 %v880
    %1176 = vmatpush1.msra.mxu0 %v879
    %1177 = vmatprep.subr.mxu0 0.0
    %1178 = vmatpush1.msra.mxu0 0.0
    %1179 = vmatprep.subr.mxu0 0.0
    %1180 = vmatpush1.msra.mxu0 0.0
    %1181 = vmatprep.subr.mxu0 0.0
    %1182 = vmatpush1.msra.mxu0 0.0
    %1183 = vmatprep.subr.mxu0 0.0
    %1184 = vmatpush1.msra.mxu0 0.0
    %1185 = vmatprep.subr.mxu0 0.0
    %1186 = vmatpush1.msra.mxu0 0.0
    %1187 = vmatprep.subr.mxu0 0.0
    %1188 = vmatpush1.msra.mxu0 0.0
    %1189 = vmatprep.subr.mxu0 0.0
    %1190 = vmatpush1.msra.mxu0 0.0
    %1191 = vmatprep.subr.mxu0 0.0
    %1192 = vmatpush1.msra.mxu0 0.0
    %1193 = vmatprep.subr.mxu0 0.0
    %1194 = vmatpush1.msra.mxu0 0.0
    %1195 = vmatprep.subr.mxu0 0.0
    %1196 = vmatpush1.msra.mxu0 0.0
    %1197 = vmatprep.subr.mxu0 0.0
    %1198 = vmatpush1.msra.mxu0 0.0
    %1199 = vmatprep.subr.mxu0 0.0
    %1200 = vmatpush1.msra.mxu0 0.0
    %1201 = vmatprep.subr.mxu0 0.0
    %1202 = vmatpush1.msra.mxu0 0.0
    %1203 = vmatprep.subr.mxu0 0.0
    %1204 = vmatpush1.msra.mxu0 0.0
    %1205 = vmatprep.subr.mxu0 0.0
    %1206 = vmatpush1.msra.mxu0 0.0
    %1207 = vmatprep.subr.mxu0 0.0
    %1208 = vmatpush1.msra.mxu0 0.0
    %1209 = vmatprep.subr.mxu0 0.0
    %1210 = vmatpush1.msra.mxu0 0.0
    %1211 = vmatprep.subr.mxu0 0.0
    %1212 = vmatpush1.msra.mxu0 0.0
    %1213 = vmatprep.subr.mxu0 0.0
    %1214 = vmatpush1.msra.mxu0 0.0
    %1215 = vmatprep.subr.mxu0 0.0
    %1216 = vmatpush1.msra.mxu0 0.0
    %1217 = vmatprep.subr.mxu0 0.0
    %1218 = vmatpush1.msra.mxu0 0.0
    %1219 = vmatprep.subr.mxu0 0.0
    %1220 = vmatpush1.msra.mxu0 0.0
    %1221 = vmatprep.subr.mxu0 0.0
    %1222 = vmatpush1.msra.mxu0 0.0
    %1223 = vmatprep.subr.mxu0 0.0
    %1224 = vmatpush1.msra.mxu0 0.0
    %1225 = vmatprep.subr.mxu0 0.0
    %1226 = vmatpush1.msra.mxu0 0.0
    %1227 = vmatprep.subr.mxu0 0.0
    %1228 = vmatpush1.msra.mxu0 0.0
    %1229 = vmatprep.subr.mxu0 0.0
    %1230 = vmatpush1.msra.mxu0 0.0
    %1231 = vmatprep.subr.mxu0 0.0
    %1232 = vmatpush1.msra.mxu0 0.0
    %1233 = vmatprep.subr.mxu0 0.0
    %1234 = vmatpush1.msra.mxu0 0.0
    %1235 = vmatprep.subr.mxu0 0.0
    %1236 = vmatpush1.msra.mxu0 0.0
    %1237 = vmatprep.subr.mxu0 0.0
    %1238 = vmatpush1.msra.mxu0 0.0
    %1239 = vmatprep.mubr.f32.mxu0 0.0
    %1240 = vmatmul.mubr.f32.gmra.mrb[0].mxu0 %v368
    %v1241 = vpop.f32.mrb[0].mxu0
    %v1242 = vadd.f32 %v1162, %v1241
    %v1243 = vpop.f32.mrb[0].mxu0
    %v1244 = vadd.f32 %v1166, %v1243
    %1245 = vdwg.mxu0
    %1246 = vmatprep.subr.mxu0 %v882
    %1247 = vmatpush1.msra.mxu0 %v881
    %1248 = vmatprep.subr.mxu0 0.0
    %1249 = vmatpush1.msra.mxu0 0.0
    %1250 = vmatprep.subr.mxu0 0.0
    %1251 = vmatpush1.msra.mxu0 0.0
    %1252 = vmatprep.subr.mxu0 0.0
    %1253 = vmatpush1.msra.mxu0 0.0
    %1254 = vmatprep.subr.mxu0 0.0
    %1255 = vmatpush1.msra.mxu0 0.0
    %1256 = vmatprep.subr.mxu0 0.0
    %1257 = vmatpush1.msra.mxu0 0.0
    %1258 = vmatprep.subr.mxu0 0.0
    %1259 = vmatpush1.msra.mxu0 0.0
    %1260 = vmatprep.subr.mxu0 0.0
    %1261 = vmatpush1.msra.mxu0 0.0
    %1262 = vmatprep.subr.mxu0 0.0
    %1263 = vmatpush1.msra.mxu0 0.0
    %1264 = vmatprep.subr.mxu0 0.0
    %1265 = vmatpush1.msra.mxu0 0.0
    %1266 = vmatprep.subr.mxu0 0.0
    %1267 = vmatpush1.msra.mxu0 0.0
    %1268 = vmatprep.subr.mxu0 0.0
    %1269 = vmatpush1.msra.mxu0 0.0
    %1270 = vmatprep.subr.mxu0 0.0
    %1271 = vmatpush1.msra.mxu0 0.0
    %1272 = vmatprep.subr.mxu0 0.0
    %1273 = vmatpush1.msra.mxu0 0.0
    %1274 = vmatprep.subr.mxu0 0.0
    %1275 = vmatpush1.msra.mxu0 0.0
    %1276 = vmatprep.subr.mxu0 0.0
    %1277 = vmatpush1.msra.mxu0 0.0
    %1278 = vmatprep.subr.mxu0 0.0
    %1279 = vmatpush1.msra.mxu0 0.0
    %1280 = vmatprep.subr.mxu0 0.0
    %1281 = vmatpush1.msra.mxu0 0.0
    %1282 = vmatprep.subr.mxu0 0.0
    %1283 = vmatpush1.msra.mxu0 0.0
    %1284 = vmatprep.subr.mxu0 0.0
    %1285 = vmatpush1.msra.mxu0 0.0
    %1286 = vmatprep.subr.mxu0 0.0
    %1287 = vmatpush1.msra.mxu0 0.0
    %1288 = vmatprep.subr.mxu0 0.0
    %1289 = vmatpush1.msra.mxu0 0.0
    %1290 = vmatprep.subr.mxu0 0.0
    %1291 = vmatpush1.msra.mxu0 0.0
    %1292 = vmatprep.subr.mxu0 0.0
    %1293 = vmatpush1.msra.mxu0 0.0
    %1294 = vmatprep.subr.mxu0 0.0
    %1295 = vmatpush1.msra.mxu0 0.0
    %1296 = vmatprep.subr.mxu0 0.0
    %1297 = vmatpush1.msra.mxu0 0.0
    %1298 = vmatprep.subr.mxu0 0.0
    %1299 = vmatpush1.msra.mxu0 0.0
    %1300 = vmatprep.subr.mxu0 0.0
    %1301 = vmatpush1.msra.mxu0 0.0
    %1302 = vmatprep.subr.mxu0 0.0
    %1303 = vmatpush1.msra.mxu0 0.0
    %1304 = vmatprep.subr.mxu0 0.0
    %1305 = vmatpush1.msra.mxu0 0.0
    %1306 = vmatprep.subr.mxu0 0.0
    %1307 = vmatpush1.msra.mxu0 0.0
    %1308 = vmatprep.subr.mxu0 0.0
    %1309 = vmatpush1.msra.mxu0 0.0
    %1310 = vmatprep.mubr.f32.mxu0 0.0
    %1311 = vmatmul.mubr.f32.gmra.mrb[0].mxu0 %v368
    %v1312 = vpop.f32.mrb[0].mxu0
    %v1313 = vadd.f32 %v1170, %v1312
    %v1314 = vpop.f32.mrb[0].mxu0
    %v1315 = vadd.f32 %v1174, %v1314
    %1316 = vdwg.mxu0
    %v1317 = vmax.f32 %v1242, 0.0
    %v1318 = vmax.f32 %v1244, 0.0
    %v1319 = vmax.f32 %v1313, 0.0
    %v1320 = vmax.f32 %v1315, 0.0
    %v1321 = vlaneseq
    %v1322 = vshrl.u32 %v1321, 7
    %v1323 = vsub.s32 1, %v1322
    %v1324 = vrot.slane %v1135, %v1323
    %v1325 = vlaneseq
    %v1326 = vshrl.u32 %v1325, 7
    %v1327 = vsub.s32 5, %v1326
    %v1328 = vrot.slane %v1135, %v1327
    %v1329 = vlaneseq
    %v1330 = vshrl.u32 %v1329, 7
    %v1331 = vsub.s32 1, %v1330
    %v1332 = vrot.slane %v1136, %v1331
    %v1336 = vlaneseq
    %v1337 = vshrl.u32 %v1336, 7
    %v1338 = vsub.s32 1, %v1337
    %v1339 = vrot.slane %v1324, %v1338
    %v1340 = vlaneseq
    %v1341 = vshrl.u32 %v1340, 7
    %v1342 = vsub.s32 1, %v1341
    %v1343 = vrot.slane %v1328, %v1342
    %v1344 = vlaneseq
    %v1345 = vshrl.u32 %v1344, 7
    %v1346 = vsub.s32 1, %v1345
    %v1347 = vrot.slane %v1332, %v1346
    %v1349 = vsel %vm543, %v1320, 0
    %1351 = vmatprep.subr.mxu0 %v985
    %1352 = vmatpush1.msra.mxu0 %v984
    %1353 = vmatprep.subr.mxu0 %v988
    %1354 = vmatpush1.msra.mxu0 %v987
    %1355 = vmatprep.subr.mxu0 %v991
    %1356 = vmatpush1.msra.mxu0 %v990
    %1357 = vmatprep.subr.mxu0 %v994
    %1358 = vmatpush1.msra.mxu0 %v993
    %1359 = vmatprep.subr.mxu0 %v997
    %1360 = vmatpush1.msra.mxu0 %v996
    %1361 = vmatprep.subr.mxu0 %v1000
    %1362 = vmatpush1.msra.mxu0 %v999
    %1363 = vmatprep.subr.mxu0 %v1003
    %1364 = vmatpush1.msra.mxu0 %v1002
    %1365 = vmatprep.subr.mxu0 %v1006
    %1366 = vmatpush1.msra.mxu0 %v1005
    %1367 = vmatprep.subr.mxu0 %v1009
    %1368 = vmatpush1.msra.mxu0 %v1008
    %1369 = vmatprep.subr.mxu0 %v1012
    %1370 = vmatpush1.msra.mxu0 %v1011
    %1371 = vmatprep.subr.mxu0 %v1015
    %1372 = vmatpush1.msra.mxu0 %v1014
    %1373 = vmatprep.subr.mxu0 %v1018
    %1374 = vmatpush1.msra.mxu0 %v1017
    %1375 = vmatprep.subr.mxu0 %v1021
    %1376 = vmatpush1.msra.mxu0 %v1020
    %1377 = vmatprep.subr.mxu0 %v1024
    %1378 = vmatpush1.msra.mxu0 %v1023
    %1379 = vmatprep.subr.mxu0 %v1027
    %1380 = vmatpush1.msra.mxu0 %v1026
    %1381 = vmatprep.subr.mxu0 %v1030
    %1382 = vmatpush1.msra.mxu0 %v1029
    %1383 = vmatprep.subr.mxu0 %v1033
    %1384 = vmatpush1.msra.mxu0 %v1032
    %1385 = vmatprep.subr.mxu0 %v1036
    %1386 = vmatpush1.msra.mxu0 %v1035
    %1387 = vmatprep.subr.mxu0 %v1039
    %1388 = vmatpush1.msra.mxu0 %v1038
    %1389 = vmatprep.subr.mxu0 %v1042
    %1390 = vmatpush1.msra.mxu0 %v1041
    %1391 = vmatprep.subr.mxu0 %v1045
    %1392 = vmatpush1.msra.mxu0 %v1044
    %1393 = vmatprep.subr.mxu0 %v1048
    %1394 = vmatpush1.msra.mxu0 %v1047
    %1395 = vmatprep.subr.mxu0 %v1051
    %1396 = vmatpush1.msra.mxu0 %v1050
    %1397 = vmatprep.subr.mxu0 %v1054
    %1398 = vmatpush1.msra.mxu0 %v1053
    %1399 = vmatprep.subr.mxu0 %v1057
    %1400 = vmatpush1.msra.mxu0 %v1056
    %1401 = vmatprep.subr.mxu0 %v1060
    %1402 = vmatpush1.msra.mxu0 %v1059
    %1403 = vmatprep.subr.mxu0 %v1063
    %1404 = vmatpush1.msra.mxu0 %v1062
    %1405 = vmatprep.subr.mxu0 %v1066
    %1406 = vmatpush1.msra.mxu0 %v1065
    %1407 = vmatprep.subr.mxu0 %v1069
    %1408 = vmatpush1.msra.mxu0 %v1068
    %1409 = vmatprep.subr.mxu0 %v1072
    %1410 = vmatpush1.msra.mxu0 %v1071
    %1411 = vmatprep.subr.mxu0 %v1075
    %1412 = vmatpush1.msra.mxu0 %v1074
    %1413 = vmatprep.subr.mxu0 %v1078
    %1414 = vmatpush1.msra.mxu0 %v1077
    %1415 = vmatprep.mubr.f32.mxu0 %v1318
    %1416 = vmatmul.mubr.f32.gmra.mrb[0].mxu0 %v1317
    %v1417 = vpop.f32.mrb[0].mxu0
    %v1418 = vadd.f32 %v1339, %v1417
    %v1419 = vpop.f32.mrb[0].mxu0
    %v1420 = vadd.f32 %v1343, %v1419
    %1421 = vdwg.mxu0
    %1422 = vmatprep.subr.mxu0 %v1081
    %1423 = vmatpush1.msra.mxu0 %v1080
    %1424 = vmatprep.subr.mxu0 %v1084
    %1425 = vmatpush1.msra.mxu0 %v1083
    %1426 = vmatprep.subr.mxu0 %v1087
    %1427 = vmatpush1.msra.mxu0 %v1086
    %1428 = vmatprep.subr.mxu0 %v1090
    %1429 = vmatpush1.msra.mxu0 %v1089
    %1430 = vmatprep.subr.mxu0 %v1093
    %1431 = vmatpush1.msra.mxu0 %v1092
    %1432 = vmatprep.subr.mxu0 %v1096
    %1433 = vmatpush1.msra.mxu0 %v1095
    %1434 = vmatprep.subr.mxu0 %v1099
    %1435 = vmatpush1.msra.mxu0 %v1098
    %1436 = vmatprep.subr.mxu0 %v1102
    %1437 = vmatpush1.msra.mxu0 %v1101
    %1438 = vmatprep.subr.mxu0 %v1105
    %1439 = vmatpush1.msra.mxu0 %v1104
    %1440 = vmatprep.subr.mxu0 %v1108
    %1441 = vmatpush1.msra.mxu0 %v1107
    %1442 = vmatprep.subr.mxu0 %v1111
    %1443 = vmatpush1.msra.mxu0 %v1110
    %1444 = vmatprep.subr.mxu0 %v1114
    %1445 = vmatpush1.msra.mxu0 %v1113
    %1446 = vmatprep.subr.mxu0 %v1117
    %1447 = vmatpush1.msra.mxu0 %v1116
    %1448 = vmatprep.subr.mxu0 %v1120
    %1449 = vmatpush1.msra.mxu0 %v1119
    %1450 = vmatprep.subr.mxu0 %v1123
    %1451 = vmatpush1.msra.mxu0 %v1122
    %1452 = vmatprep.subr.mxu0 %v1126
    %1453 = vmatpush1.msra.mxu0 %v1125
    %1454 = vmatprep.subr.mxu0 %v1129
    %1455 = vmatpush1.msra.mxu0 %v1128
    %1456 = vmatprep.subr.mxu0 %v1132
    %1457 = vmatpush1.msra.mxu0 %v1131
    %1458 = vmatprep.subr.mxu0 0.0
    %1459 = vmatpush1.msra.mxu0 0.0
    %1460 = vmatprep.subr.mxu0 0.0
    %1461 = vmatpush1.msra.mxu0 0.0
    %1462 = vmatprep.subr.mxu0 0.0
    %1463 = vmatpush1.msra.mxu0 0.0
    %1464 = vmatprep.subr.mxu0 0.0
    %1465 = vmatpush1.msra.mxu0 0.0
    %1466 = vmatprep.subr.mxu0 0.0
    %1467 = vmatpush1.msra.mxu0 0.0
    %1468 = vmatprep.subr.mxu0 0.0
    %1469 = vmatpush1.msra.mxu0 0.0
    %1470 = vmatprep.subr.mxu0 0.0
    %1471 = vmatpush1.msra.mxu0 0.0
    %1472 = vmatprep.subr.mxu0 0.0
    %1473 = vmatpush1.msra.mxu0 0.0
    %1474 = vmatprep.subr.mxu0 0.0
    %1475 = vmatpush1.msra.mxu0 0.0
    %1476 = vmatprep.subr.mxu0 0.0
    %1477 = vmatpush1.msra.mxu0 0.0
    %1478 = vmatprep.subr.mxu0 0.0
    %1479 = vmatpush1.msra.mxu0 0.0
    %1480 = vmatprep.subr.mxu0 0.0
    %1481 = vmatpush1.msra.mxu0 0.0
    %1482 = vmatprep.subr.mxu0 0.0
    %1483 = vmatpush1.msra.mxu0 0.0
    %1484 = vmatprep.subr.mxu0 0.0
    %1485 = vmatpush1.msra.mxu0 0.0
    %1486 = vmatprep.mubr.f32.mxu0 %v1349
    %1487 = vmatmul.mubr.f32.gmra.mrb[0].mxu0 %v1319
    %v1488 = vpop.f32.mrb[0].mxu0
    %v1489 = vadd.f32 %v1418, %v1488
    %v1490 = vpop.f32.mrb[0].mxu0
    %v1491 = vadd.f32 %v1420, %v1490
    %1492 = vdwg.mxu0
    %1493 = vmatprep.subr.mxu0 0.0
    %1494 = vmatpush1.msra.mxu0 %v986
    %1495 = vmatprep.subr.mxu0 0.0
    %1496 = vmatpush1.msra.mxu0 %v989
    %1497 = vmatprep.subr.mxu0 0.0
    %1498 = vmatpush1.msra.mxu0 %v992
    %1499 = vmatprep.subr.mxu0 0.0
    %1500 = vmatpush1.msra.mxu0 %v995
    %1501 = vmatprep.subr.mxu0 0.0
    %1502 = vmatpush1.msra.mxu0 %v998
    %1503 = vmatprep.subr.mxu0 0.0
    %1504 = vmatpush1.msra.mxu0 %v1001
    %1505 = vmatprep.subr.mxu0 0.0
    %1506 = vmatpush1.msra.mxu0 %v1004
    %1507 = vmatprep.subr.mxu0 0.0
    %1508 = vmatpush1.msra.mxu0 %v1007
    %1509 = vmatprep.subr.mxu0 0.0
    %1510 = vmatpush1.msra.mxu0 %v1010
    %1511 = vmatprep.subr.mxu0 0.0
    %1512 = vmatpush1.msra.mxu0 %v1013
    %1513 = vmatprep.subr.mxu0 0.0
    %1514 = vmatpush1.msra.mxu0 %v1016
    %1515 = vmatprep.subr.mxu0 0.0
    %1516 = vmatpush1.msra.mxu0 %v1019
    %1517 = vmatprep.subr.mxu0 0.0
    %1518 = vmatpush1.msra.mxu0 %v1022
    %1519 = vmatprep.subr.mxu0 0.0
    %1520 = vmatpush1.msra.mxu0 %v1025
    %1521 = vmatprep.subr.mxu0 0.0
    %1522 = vmatpush1.msra.mxu0 %v1028
    %1523 = vmatprep.subr.mxu0 0.0
    %1524 = vmatpush1.msra.mxu0 %v1031
    %1525 = vmatprep.subr.mxu0 0.0
    %1526 = vmatpush1.msra.mxu0 %v1034
    %1527 = vmatprep.subr.mxu0 0.0
    %1528 = vmatpush1.msra.mxu0 %v1037
    %1529 = vmatprep.subr.mxu0 0.0
    %1530 = vmatpush1.msra.mxu0 %v1040
    %1531 = vmatprep.subr.mxu0 0.0
    %1532 = vmatpush1.msra.mxu0 %v1043
    %1533 = vmatprep.subr.mxu0 0.0
    %1534 = vmatpush1.msra.mxu0 %v1046
    %1535 = vmatprep.subr.mxu0 0.0
    %1536 = vmatpush1.msra.mxu0 %v1049
    %1537 = vmatprep.subr.mxu0 0.0
    %1538 = vmatpush1.msra.mxu0 %v1052
    %1539 = vmatprep.subr.mxu0 0.0
    %1540 = vmatpush1.msra.mxu0 %v1055
    %1541 = vmatprep.subr.mxu0 0.0
    %1542 = vmatpush1.msra.mxu0 %v1058
    %1543 = vmatprep.subr.mxu0 0.0
    %1544 = vmatpush1.msra.mxu0 %v1061
    %1545 = vmatprep.subr.mxu0 0.0
    %1546 = vmatpush1.msra.mxu0 %v1064
    %1547 = vmatprep.subr.mxu0 0.0
    %1548 = vmatpush1.msra.mxu0 %v1067
    %1549 = vmatprep.subr.mxu0 0.0
    %1550 = vmatpush1.msra.mxu0 %v1070
    %1551 = vmatprep.subr.mxu0 0.0
    %1552 = vmatpush1.msra.mxu0 %v1073
    %1553 = vmatprep.subr.mxu0 0.0
    %1554 = vmatpush1.msra.mxu0 %v1076
    %1555 = vmatprep.subr.mxu0 0.0
    %1556 = vmatpush1.msra.mxu0 %v1079
    %1557 = vmatprep.mubr.f32.mxu0 %v1318
    %1558 = vmatmul.mubr.f32.gmra.mrb[0].mxu0 %v1317
    %v1559 = vpop.f32.mrb[0].mxu0
    %v1560 = vadd.f32 %v1347, %v1559
    %v1561 = vpop.f32.mrb[0].mxu0
    %1562 = vdwg.mxu0
    %1563 = vmatprep.subr.mxu0 0.0
    %1564 = vmatpush1.msra.mxu0 %v1082
    %1565 = vmatprep.subr.mxu0 0.0
    %1566 = vmatpush1.msra.mxu0 %v1085
    %1567 = vmatprep.subr.mxu0 0.0
    %1568 = vmatpush1.msra.mxu0 %v1088
    %1569 = vmatprep.subr.mxu0 0.0
    %1570 = vmatpush1.msra.mxu0 %v1091
    %1571 = vmatprep.subr.mxu0 0.0
    %1572 = vmatpush1.msra.mxu0 %v1094
    %1573 = vmatprep.subr.mxu0 0.0
    %1574 = vmatpush1.msra.mxu0 %v1097
    %1575 = vmatprep.subr.mxu0 0.0
    %1576 = vmatpush1.msra.mxu0 %v1100
    %1577 = vmatprep.subr.mxu0 0.0
    %1578 = vmatpush1.msra.mxu0 %v1103
    %1579 = vmatprep.subr.mxu0 0.0
    %1580 = vmatpush1.msra.mxu0 %v1106
    %1581 = vmatprep.subr.mxu0 0.0
    %1582 = vmatpush1.msra.mxu0 %v1109
    %1583 = vmatprep.subr.mxu0 0.0
    %1584 = vmatpush1.msra.mxu0 %v1112
    %1585 = vmatprep.subr.mxu0 0.0
    %1586 = vmatpush1.msra.mxu0 %v1115
    %1587 = vmatprep.subr.mxu0 0.0
    %1588 = vmatpush1.msra.mxu0 %v1118
    %1589 = vmatprep.subr.mxu0 0.0
    %1590 = vmatpush1.msra.mxu0 %v1121
    %1591 = vmatprep.subr.mxu0 0.0
    %1592 = vmatpush1.msra.mxu0 %v1124
    %1593 = vmatprep.subr.mxu0 0.0
    %1594 = vmatpush1.msra.mxu0 %v1127
    %1595 = vmatprep.subr.mxu0 0.0
    %1596 = vmatpush1.msra.mxu0 %v1130
    %1597 = vmatprep.subr.mxu0 0.0
    %1598 = vmatpush1.msra.mxu0 %v1133
    %1599 = vmatprep.subr.mxu0 0.0
    %1600 = vmatpush1.msra.mxu0 0.0
    %1601 = vmatprep.subr.mxu0 0.0
    %1602 = vmatpush1.msra.mxu0 0.0
    %1603 = vmatprep.subr.mxu0 0.0
    %1604 = vmatpush1.msra.mxu0 0.0
    %1605 = vmatprep.subr.mxu0 0.0
    %1606 = vmatpush1.msra.mxu0 0.0
    %1607 = vmatprep.subr.mxu0 0.0
    %1608 = vmatpush1.msra.mxu0 0.0
    %1609 = vmatprep.subr.mxu0 0.0
    %1610 = vmatpush1.msra.mxu0 0.0
    %1611 = vmatprep.subr.mxu0 0.0
    %1612 = vmatpush1.msra.mxu0 0.0
    %1613 = vmatprep.subr.mxu0 0.0
    %1614 = vmatpush1.msra.mxu0 0.0
    %1615 = vmatprep.subr.mxu0 0.0
    %1616 = vmatpush1.msra.mxu0 0.0
    %1617 = vmatprep.subr.mxu0 0.0
    %1618 = vmatpush1.msra.mxu0 0.0
    %1619 = vmatprep.subr.mxu0 0.0
    %1620 = vmatpush1.msra.mxu0 0.0
    %1621 = vmatprep.subr.mxu0 0.0
    %1622 = vmatpush1.msra.mxu0 0.0
    %1623 = vmatprep.subr.mxu0 0.0
    %1624 = vmatpush1.msra.mxu0 0.0
    %1625 = vmatprep.subr.mxu0 0.0
    %1626 = vmatpush1.msra.mxu0 0.0
    %1627 = vmatprep.mubr.f32.mxu0 %v1349
    %1628 = vmatmul.mubr.f32.gmra.mrb[0].mxu0 %v1319
    %v1629 = vpop.f32.mrb[0].mxu0
    %v1630 = vadd.f32 %v1560, %v1629
    %v1631 = vpop.f32.mrb[0].mxu0
    %1632 = vdwg.mxu0
    %v1633 = vmax.f32 %v1489, 0.0
    %v1634 = vmax.f32 %v1491, 0.0
    %v1635 = vmax.f32 %v1630, 0.0
    %v1636 = vlaneseq
    %v1637 = vshrl.u32 %v1636, 7
    %v1638 = vsub.s32 2, %v1637
    %v1639 = vrot.slane %v1135, %v1638
    %v1640 = vlaneseq
    %v1641 = vshrl.u32 %v1640, 7
    %v1642 = vsub.s32 6, %v1641
    %v1643 = vrot.slane %v1135, %v1642
    %v1644 = vlaneseq
    %v1645 = vshrl.u32 %v1644, 7
    %v1646 = vsub.s32 2, %v1645
    %v1647 = vrot.slane %v1136, %v1646
    %v1651 = vlaneseq
    %v1652 = vshrl.u32 %v1651, 7
    %v1653 = vsub.s32 2, %v1652
    %v1654 = vrot.slane %v1639, %v1653
    %v1655 = vlaneseq
    %v1656 = vshrl.u32 %v1655, 7
    %v1657 = vsub.s32 2, %v1656
    %v1658 = vrot.slane %v1643, %v1657
    %v1659 = vlaneseq
    %v1660 = vshrl.u32 %v1659, 7
    %v1661 = vsub.s32 2, %v1660
    %v1662 = vrot.slane %v1647, %v1661
    %v1663 = vmul.f32 %v1633, %v1654
    %v1664 = vmul.f32 %v1634, %v1658
    %v1665 = vmul.f32 %v1635, %v1662
    %v1666 = vsel %vm862, %v1663, 0.0
    %v1667 = vsel %vm862, %v1664, 0.0
    %v1668 = vadd.f32 %v1666, %v1667
    %v1669 = vsel %vm866, %v1665, 0.0
    %v1670 = vadd.f32 %v1668, %v1669
    %1671 = vadd.xlane.f32.xlu0 %v1670
    %v1672 = vpop.xlane.xlu0 %1671
    %v1673 = vlaneseq
    %v1674 = vshrl.u32 %v1673, 7
    %v1675 = vsub.s32 3, %v1674
    %v1676 = vrot.slane %v1135, %v1675
    %v1677 = vadd.f32 %v1672, %v1676
    %1679 = vrot.lane.b32.xlu0 %v1677, 1
    %v1680 = vpop.permute.xlu0 %1679
    %vm1682 = vcmask 9224
    %1683 = vst.msk [vmem:[#allocation10] sm:$0x3] %vm1682, %v1680
    // Predicated region
    $region34: #{tpu_custom_call.1} parent=1 // pred_check
      _
    $region35: #{tpu_custom_call.1} parent=1 // pred_check_branch
      %1685 = sbr.rel (0) target = $region37
    $region36: #{tpu_custom_call.1} parent=1 // pred_region
      %s1687 = ssub.s32 32, 32
      %1688 = vsyncadd [#allocation4], %s1687
      %s1690 = sshll.u32 [#allocation10], 4
      %s1691 = int_to_ptr.vmem [resolvable:$true] %s1690
      %1693 = dma.vmem_to_hbm [thread:$0]  %s1691, 32, %s4, [#allocation4]
    $region37: #{tpu_custom_call.1} parent=1 // pred_fallthru
      _
    // Predicated region
    $region38: #{tpu_custom_call.1} parent=1 // pred_check
      _
    $region39: #{tpu_custom_call.1} parent=1 // pred_check_branch
      %1695 = sbr.rel (0) target = $region41
    $region40: #{tpu_custom_call.1} parent=1 // pred_region
      %1696 = dma.done [#allocation4], 32
    $region41: #{tpu_custom_call.1} parent=1 // pred_fallthru
      _
    %1697 = vsyncpa [#allocation3], 1
    %1698 = vsyncpa [#allocation6], 1
    %1699 = vsyncpa [#allocation9], 1
    %1700 = vsyncpa [#allocation4], 1

</llo_original>
